<compile_context>
chip_gen: v7x
topology: tpu7x:2x2x1
jax: 0.10.0
libtpu: 0.0.40
codegen_flags: <defaults>
</compile_context>

<pallas_src>
import jax
import jax.numpy as jnp
from jax.experimental import pallas as pl
from jax.experimental.pallas import tpu as pltpu

# ------------------------ shapes (small, module-consistent) ------------------
B, T, F = 2, 16, 1024          # batch, temporal segments, n_feature
H1, H2 = 1024, 128             # fc1 / fc2 widths (fixed by the module)
R = B * T                      # flattened rows

TN = 512                       # H1 chunk streamed per grid step (2 steps)
N_STEPS = H1 // TN


def scorer_kernel(x_ref, w1_ref, b1_ref, w2_ref, b2_ref, wc_ref, bc_ref,
                  pool_ref, out_ref, acc_ref):
    j = pl.program_id(0)

    @pl.when(j == 0)
    def _():
        acc_ref[...] = jnp.zeros_like(acc_ref)

    # fc1 chunk: (R, F) @ (F, TN) -> f32, bias + ReLU (dropout == identity in eval)
    h1 = jnp.dot(x_ref[...], w1_ref[...], preferred_element_type=jnp.float32)
    h1 = jnp.maximum(h1 + b1_ref[...], 0.0)

    # fc2 partial: (R, TN) @ (TN, H2), accumulated in f32 VMEM scratch
    acc_ref[...] += jnp.dot(h1.astype(jnp.bfloat16), w2_ref[...],
                            preferred_element_type=jnp.float32)

    @pl.when(j == pl.num_programs(0) - 1)
    def _():
        h2 = jnp.maximum(acc_ref[...] + b2_ref[...], 0.0)              # (R, H2) f32
        # classifier (N=1): VPU multiply + lane reduction instead of an MXU matmul
        logits = jnp.sum(h2 * wc_ref[...], axis=-1, keepdims=True) + bc_ref[...]
        scores = jax.nn.sigmoid(logits)                                 # (R, 1) f32
        # temporal mean per batch element: (B, R) @ (R, 1) -> (B, 1), single store
        out_ref[...] = jnp.dot(pool_ref[...], scores,
                               preferred_element_type=jnp.float32
                               ).astype(out_ref.dtype)


def prepare_scorer_params(params):
    """One-time weight prep: transpose to (K, N) layout and cast matmul weights
    to bf16.  Do this at init, NOT per forward call."""
    w1, b1, w2, b2, wc, bc = params
    pool = jnp.repeat(jnp.eye(B, dtype=jnp.float32), T, axis=1) / T   # (B, R)
    return (
        jnp.asarray(w1.T, jnp.bfloat16),                # (F, H1)
        jnp.asarray(b1.reshape(1, H1), jnp.float32),
        jnp.asarray(w2.T, jnp.bfloat16),                # (H1, H2)
        jnp.asarray(b2.reshape(1, H2), jnp.float32),
        jnp.asarray(wc.reshape(1, H2), jnp.float32),    # classifier row (f32)
        jnp.asarray(bc.reshape(1, 1), jnp.float32),
        pool,
    )


def scorer_pallas(x, prepared):
    w1t, b1, w2t, b2, wc_row, bc, pool = prepared
    x2 = x.reshape(R, F).astype(jnp.bfloat16)

    in_specs = [
        pl.BlockSpec((R, F),   lambda j: (0, 0)),   # x: resident, fetched once
        pl.BlockSpec((F, TN),  lambda j: (0, j)),   # w1: streamed over H1
        pl.BlockSpec((1, TN),  lambda j: (0, j)),   # b1 chunk
        pl.BlockSpec((TN, H2), lambda j: (j, 0)),   # w2: streamed over H1
        pl.BlockSpec((1, H2),  lambda j: (0, 0)),   # b2
        pl.BlockSpec((1, H2),  lambda j: (0, 0)),   # classifier row
        pl.BlockSpec((1, 1),   lambda j: (0, 0)),   # classifier bias
        pl.BlockSpec((B, R),   lambda j: (0, 0)),   # mean-pool matrix
    ]

    return pl.pallas_call(
        scorer_kernel,
        grid=(N_STEPS,),
        in_specs=in_specs,
        out_specs=pl.BlockSpec((B, 1), lambda j: (0, 0)),
        out_shape=jax.ShapeDtypeStruct((B, 1), jnp.float32),
        scratch_shapes=[pltpu.VMEM((R, H2), jnp.float32)],
        compiler_params=pltpu.CompilerParams(
            dimension_semantics=("arbitrary",),        # reduction over H1 chunks
            vmem_limit_bytes=16 * 1024 * 1024,
        ),
    )(x2, w1t, b1, w2t, b2, wc_row, bc, pool)


# ---------------- pure-JAX reference mirroring the PyTorch forward -----------
def scorer_ref(x, params):
    w1, b1, w2, b2, wc, bc = params
    h1 = jax.nn.relu(x @ w1.T + b1)
    h2 = jax.nn.relu(h1 @ w2.T + b2)
    s = jax.nn.sigmoid(h2 @ wc.T + bc)     # (B, T, 1)
    return jnp.mean(s, axis=1)             # (B, 1)


if __name__ == "__main__":
    key = jax.random.PRNGKey(0)
    kx, k1, k2, k3 = jax.random.split(key, 4)

    def xavier_uniform(k, shape):
        fan_out, fan_in = shape
        a = (6.0 / (fan_in + fan_out)) ** 0.5
        return jax.random.uniform(k, shape, jnp.float32, minval=-a, maxval=a)

    x = jax.random.normal(kx, (B, T, F), jnp.float32)
    # weights_init: xavier_uniform_ weights, zero biases
    w1 = xavier_uniform(k1, (H1, F)); b1 = jnp.zeros((H1,), jnp.float32)
    w2 = xavier_uniform(k2, (H2, H1)); b2 = jnp.zeros((H2,), jnp.float32)
    wc = xavier_uniform(k3, (1, H2)); bc = jnp.zeros((1,), jnp.float32)
    params = (w1, b1, w2, b2, wc, bc)

    prepared = jax.tree.map(jax.block_until_ready, prepare_scorer_params(params))

    out = jax.block_until_ready(scorer_pallas(x, prepared))
    ref = scorer_ref(x, params)
    max_err = float(jnp.max(jnp.abs(out - ref)))
    assert out.shape == (B, 1), out.shape
    # bf16 weights/activations -> loosened tolerance vs f32 reference
    assert jnp.allclose(out, ref, rtol=2e-2, atol=2e-2), f"max err {max_err}"
    print("KERNEL_OK")
</pallas_src>

<mosaic_0001>
module attributes {stable_mosaic.version = 11 : i64} {
  func.func @scorer_kernel(%arg0: i32, %arg1: memref<32x1024xbf16, #tpu.memory_space<vmem>>, %arg2: memref<1024x512xbf16, #tpu.memory_space<vmem>>, %arg3: memref<1x512xf32, #tpu.memory_space<vmem>>, %arg4: memref<512x128xbf16, #tpu.memory_space<vmem>>, %arg5: memref<1x128xf32, #tpu.memory_space<vmem>>, %arg6: memref<1x128xf32, #tpu.memory_space<vmem>>, %arg7: memref<1x1xf32, #tpu.memory_space<vmem>>, %arg8: memref<2x32xf32, #tpu.memory_space<vmem>>, %arg9: memref<2x1xf32, #tpu.memory_space<vmem>>, %arg10: memref<32x128xf32, #tpu.memory_space<vmem>>) attributes {dimension_semantics = [#tpu.dimension_semantics<arbitrary>], iteration_bounds = array<i64: 2>, scalar_prefetch = 0 : i64, scratch_operands = 1 : i64, tpu.core_type = #tpu.core_type<tc>, window_params = [{pipeline_mode = #tpu.pipeline_mode<synchronous>, transform_indices = @transform_0, window_bounds = array<i64: 32, 1024>}, {transform_indices = @transform_1, window_bounds = array<i64: 1024, 512>}, {transform_indices = @transform_2, window_bounds = array<i64: 1, 512>}, {transform_indices = @transform_3, window_bounds = array<i64: 512, 128>}, {pipeline_mode = #tpu.pipeline_mode<synchronous>, transform_indices = @transform_4, window_bounds = array<i64: 1, 128>}, {pipeline_mode = #tpu.pipeline_mode<synchronous>, transform_indices = @transform_5, window_bounds = array<i64: 1, 128>}, {pipeline_mode = #tpu.pipeline_mode<synchronous>, transform_indices = @transform_6, window_bounds = array<i64: 1, 1>}, {pipeline_mode = #tpu.pipeline_mode<synchronous>, transform_indices = @transform_7, window_bounds = array<i64: 2, 32>}, {pipeline_mode = #tpu.pipeline_mode<synchronous>, transform_indices = @transform_8, window_bounds = array<i64: 2, 1>}]} {
    %c0_i32 = arith.constant 0 : i32
    %0 = arith.cmpi eq, %arg0, %c0_i32 : i32
    %1 = arith.extui %0 : i1 to i32
    %c0_i32_0 = arith.constant 0 : i32
    %2 = arith.cmpi ne, %1, %c0_i32_0 : i32
    scf.if %2 {
      %cst_15 = arith.constant 0.000000e+00 : f32
      %20 = vector.broadcast %cst_15 : f32 to vector<32x128xf32>
      %c0_16 = arith.constant 0 : index
      %c0_17 = arith.constant 0 : index
      %21 = vector.load %arg10[%c0_16, %c0_17] : memref<32x128xf32, #tpu.memory_space<vmem>>, vector<32x128xf32>
      tpu.vector_store %arg10[%c0_16, %c0_17], %20 {strides = array<i32>} : memref<32x128xf32, #tpu.memory_space<vmem>>, vector<32x128xf32>,
    } else {
    }
    %c0 = arith.constant 0 : index
    %c0_1 = arith.constant 0 : index
    %3 = vector.load %arg1[%c0, %c0_1] : memref<32x1024xbf16, #tpu.memory_space<vmem>>, vector<32x1024xbf16>
    %c0_2 = arith.constant 0 : index
    %c0_3 = arith.constant 0 : index
    %4 = vector.load %arg2[%c0_2, %c0_3] : memref<1024x512xbf16, #tpu.memory_space<vmem>>, vector<1024x512xbf16>
    %cst = arith.constant dense<0.000000e+00> : vector<32x512xf32>
    %5 = tpu.matmul %3, %4, %cst {dimension_numbers = #tpu.dot_dimension_numbers<[1], [0], [0], [1], [0, 0, 1, 1], [], []>} : vector<32x1024xbf16>, vector<1024x512xbf16>, vector<32x512xf32> -> vector<32x512xf32>
    %c0_4 = arith.constant 0 : index
    %c0_5 = arith.constant 0 : index
    %6 = vector.load %arg3[%c0_4, %c0_5] : memref<1x512xf32, #tpu.memory_space<vmem>>, vector<1x512xf32>
    %7 = vector.broadcast %6 : vector<1x512xf32> to vector<32x512xf32>
    %8 = arith.addf %5, %7 : vector<32x512xf32>
    %cst_6 = arith.constant 0.000000e+00 : f32
    %9 = vector.broadcast %cst_6 : f32 to vector<32x512xf32>
    %10 = arith.maximumf %8, %9 : vector<32x512xf32>
    %c0_7 = arith.constant 0 : index
    %c0_8 = arith.constant 0 : index
    %11 = vector.load %arg10[%c0_7, %c0_8] : memref<32x128xf32, #tpu.memory_space<vmem>>, vector<32x128xf32>
    %12 = arith.truncf %10 : vector<32x512xf32> to vector<32x512xbf16>
    %c0_9 = arith.constant 0 : index
    %c0_10 = arith.constant 0 : index
    %13 = vector.load %arg4[%c0_9, %c0_10] : memref<512x128xbf16, #tpu.memory_space<vmem>>, vector<512x128xbf16>
    %cst_11 = arith.constant dense<0.000000e+00> : vector<32x128xf32>
    %14 = tpu.matmul %12, %13, %cst_11 {dimension_numbers = #tpu.dot_dimension_numbers<[1], [0], [0], [1], [0, 0, 1, 1], [], []>} : vector<32x512xbf16>, vector<512x128xbf16>, vector<32x128xf32> -> vector<32x128xf32>
    %15 = arith.addf %11, %14 : vector<32x128xf32>
    %c0_12 = arith.constant 0 : index
    %c0_13 = arith.constant 0 : index
    %16 = vector.load %arg10[%c0_12, %c0_13] : memref<32x128xf32, #tpu.memory_space<vmem>>, vector<32x128xf32>
    tpu.vector_store %arg10[%c0_12, %c0_13], %15 {strides = array<i32>} : memref<32x128xf32, #tpu.memory_space<vmem>>, vector<32x128xf32>,
    %c1_i32 = arith.constant 1 : i32
    %17 = arith.cmpi eq, %arg0, %c1_i32 : i32
    %18 = arith.extui %17 : i1 to i32
    %c0_i32_14 = arith.constant 0 : i32
    %19 = arith.cmpi ne, %18, %c0_i32_14 : i32
    scf.if %19 {
      %c0_15 = arith.constant 0 : index
      %c0_16 = arith.constant 0 : index
      %20 = vector.load %arg10[%c0_15, %c0_16] : memref<32x128xf32, #tpu.memory_space<vmem>>, vector<32x128xf32>
      %c0_17 = arith.constant 0 : index
      %c0_18 = arith.constant 0 : index
      %21 = vector.load %arg5[%c0_17, %c0_18] : memref<1x128xf32, #tpu.memory_space<vmem>>, vector<1x128xf32>
      %22 = vector.broadcast %21 : vector<1x128xf32> to vector<32x128xf32>
      %23 = arith.addf %20, %22 : vector<32x128xf32>
      %cst_19 = arith.constant 0.000000e+00 : f32
      %24 = vector.broadcast %cst_19 : f32 to vector<32x128xf32>
      %25 = arith.maximumf %23, %24 : vector<32x128xf32>
      %c0_20 = arith.constant 0 : index
      %c0_21 = arith.constant 0 : index
      %26 = vector.load %arg6[%c0_20, %c0_21] : memref<1x128xf32, #tpu.memory_space<vmem>>, vector<1x128xf32>
      %27 = vector.broadcast %26 : vector<1x128xf32> to vector<32x128xf32>
      %28 = arith.mulf %25, %27 : vector<32x128xf32>
      %cst_22 = arith.constant dense<0.000000e+00> : vector<32xf32>
      %29 = vector.multi_reduction <add>, %28, %cst_22 [1] : vector<32x128xf32> to vector<32xf32>
      %30 = vector.shape_cast %29 : vector<32xf32> to vector<32x1xf32>
      %c0_23 = arith.constant 0 : index
      %c0_24 = arith.constant 0 : index
      %31 = vector.load %arg7[%c0_23, %c0_24] : memref<1x1xf32, #tpu.memory_space<vmem>>, vector<1x1xf32>
      %32 = vector.broadcast %31 : vector<1x1xf32> to vector<32x1xf32>
      %33 = arith.addf %30, %32 : vector<32x1xf32>
      %34 = arith.negf %33 : vector<32x1xf32>
      %35 = math.exp %34 : vector<32x1xf32>
      %cst_25 = arith.constant 1.000000e+00 : f32
      %36 = vector.broadcast %cst_25 : f32 to vector<32x1xf32>
      %37 = arith.addf %36, %35 : vector<32x1xf32>
      %38 = arith.divf %36, %37 : vector<32x1xf32>
      %c0_26 = arith.constant 0 : index
      %c0_27 = arith.constant 0 : index
      %39 = vector.load %arg8[%c0_26, %c0_27] : memref<2x32xf32, #tpu.memory_space<vmem>>, vector<2x32xf32>
      %cst_28 = arith.constant dense<0.000000e+00> : vector<2x1xf32>
      %40 = tpu.matmul %39, %38, %cst_28 {dimension_numbers = #tpu.dot_dimension_numbers<[1], [0], [0], [1], [0, 0, 1, 1], [], []>} : vector<2x32xf32>, vector<32x1xf32>, vector<2x1xf32> -> vector<2x1xf32>
      %c0_29 = arith.constant 0 : index
      %c0_30 = arith.constant 0 : index
      %41 = vector.load %arg9[%c0_29, %c0_30] : memref<2x1xf32, #tpu.memory_space<vmem>>, vector<2x1xf32>
      tpu.vector_store %arg9[%c0_29, %c0_30], %40 {strides = array<i32>} : memref<2x1xf32, #tpu.memory_space<vmem>>, vector<2x1xf32>,
    } else {
    }
    return
  }
  func.func @transform_0(%arg0: i32) -> (i32, i32) {
    %c0_i32 = arith.constant 0 : i32
    %c0_i32_0 = arith.constant 0 : i32
    %c0_i32_1 = arith.constant 0 : i32
    return %c0_i32, %c0_i32_0 : i32, i32
  }
  func.func @transform_1(%arg0: i32) -> (i32, i32) {
    %c0_i32 = arith.constant 0 : i32
    %c0_i32_0 = arith.constant 0 : i32
    return %c0_i32, %arg0 : i32, i32
  }
  func.func @transform_2(%arg0: i32) -> (i32, i32) {
    %c0_i32 = arith.constant 0 : i32
    %c0_i32_0 = arith.constant 0 : i32
    return %c0_i32, %arg0 : i32, i32
  }
  func.func @transform_3(%arg0: i32) -> (i32, i32) {
    %c0_i32 = arith.constant 0 : i32
    %c0_i32_0 = arith.constant 0 : i32
    return %arg0, %c0_i32 : i32, i32
  }
  func.func @transform_4(%arg0: i32) -> (i32, i32) {
    %c0_i32 = arith.constant 0 : i32
    %c0_i32_0 = arith.constant 0 : i32
    %c0_i32_1 = arith.constant 0 : i32
    return %c0_i32, %c0_i32_0 : i32, i32
  }
  func.func @transform_5(%arg0: i32) -> (i32, i32) {
    %c0_i32 = arith.constant 0 : i32
    %c0_i32_0 = arith.constant 0 : i32
    %c0_i32_1 = arith.constant 0 : i32
    return %c0_i32, %c0_i32_0 : i32, i32
  }
  func.func @transform_6(%arg0: i32) -> (i32, i32) {
    %c0_i32 = arith.constant 0 : i32
    %c0_i32_0 = arith.constant 0 : i32
    %c0_i32_1 = arith.constant 0 : i32
    return %c0_i32, %c0_i32_0 : i32, i32
  }
  func.func @transform_7(%arg0: i32) -> (i32, i32) {
    %c0_i32 = arith.constant 0 : i32
    %c0_i32_0 = arith.constant 0 : i32
    %c0_i32_1 = arith.constant 0 : i32
    return %c0_i32, %c0_i32_0 : i32, i32
  }
  func.func @transform_8(%arg0: i32) -> (i32, i32) {
    %c0_i32 = arith.constant 0 : i32
    %c0_i32_0 = arith.constant 0 : i32
    %c0_i32_1 = arith.constant 0 : i32
    return %c0_i32, %c0_i32_0 : i32, i32
  }
}

</mosaic_0001>

<llo_original>
// kernel: tpu_custom_call.1
$region0: #{tpu_custom_call.1}
  #allocation0 [shape = 'u32[]', space=smem, size = 0x4, offset = 0x4, fixed_abs, tag = 'smem constant byte address 0x4 - core index']
  #allocation1 [shape = 'u32[144,128]{1,0:T(1,128)}', space=vmem, size = 0x12000, scoped, tag = 'internal scratch']
  #allocation2 [shape = 'f32[32,128]{1,0:T(8,128)}', space=vmem, size = 0x4000, scoped, tag = 'scratch operand']
  #allocation3 [shape = 'f32[1,1]{1,0:T(1,128)S(1)}', space=vmem, size = 0x200, scoped, tag = 'scoped memory for tpu_custom_call.1']
  %s0 = inlined_call_operand.hbm [shape: bf16[32,1024], index: 0, kind: input, shape index: {}]
  %s1 = inlined_call_operand.hbm [shape: bf16[1024,1024], index: 1, kind: input, shape index: {}]
  %s2 = inlined_call_operand.hbm [shape: f32[1,1024], index: 2, kind: input, shape index: {}]
  %s3 = inlined_call_operand.hbm [shape: bf16[1024,128], index: 3, kind: input, shape index: {}]
  %s4 = inlined_call_operand.hbm [shape: f32[1,128], index: 4, kind: input, shape index: {}]
  %s5 = inlined_call_operand.hbm [shape: f32[1,128], index: 5, kind: input, shape index: {}]
  %s6 = inlined_call_operand.<no memory space> [shape: f32[1,1], index: 6, kind: input, shape index: {}]
  %s7 = inlined_call_operand.hbm [shape: f32[2,32], index: 7, kind: input, shape index: {}]
  %s8 = inlined_call_operand.vmem [shape: f32[2,1], index: 8, kind: output, shape index: {}]
  %s9 = sld [smem:[#allocation0]]
  $region101: #{tpu_custom_call.1} parent=0
    _
  %s11 = ssub.s32 1, %s9
  %s12 = scalar_select 0, %s11, %s9
  %v13 = vstv %s6
  %14 = vst [vmem:[#allocation3] sm:$0x1] %v13
  $region1: #{tpu_custom_call.1} parent=0
    #allocation4 [shape = 'u8[65536]{0}', space=vmem, size = 0x10000, scoped, tag = 'input window, operand 0, single buffered']
    #allocation5 [shape = 's32[2]{0}', space=sflag, size = 0x8, scoped, tag = 'scoped memory for tpu_custom_call.1']
    #allocation6 [shape = 'u8[2097152]{0}', space=vmem, size = 0x200000, scoped, tag = 'input window, operand 1']
    #allocation7 [shape = 's32[2]{0}', space=sflag, size = 0x8, scoped, tag = 'scoped memory for tpu_custom_call.1']
    #allocation8 [shape = 'u8[4096]{0}', space=vmem, size = 0x1000, scoped, tag = 'input window, operand 2']
    #allocation9 [shape = 'u8[262144]{0}', space=vmem, size = 0x40000, scoped, tag = 'input window, operand 3']
    #allocation10 [shape = 's32[2]{0}', space=sflag, size = 0x8, scoped, tag = 'scoped memory for tpu_custom_call.1']
    #allocation11 [shape = 'u8[512]{0}', space=vmem, size = 0x400, scoped, tag = 'input window, operand 4, single buffered']
    #allocation12 [shape = 'u8[512]{0}', space=vmem, size = 0x400, scoped, tag = 'input window, operand 5, single buffered']
    #allocation13 [shape = 's32[1]{0}', space=sflag, size = 0x4, scoped, tag = 'scoped memory for tpu_custom_call.1']
    #allocation14 [shape = 'u8[1024]{0}', space=vmem, size = 0x400, scoped, tag = 'input window, operand 7, single buffered']
    %15 = vsyncpa [#allocation5], 0
    %16 = vsyncpa [#allocation7], 0
    %s17 = scalar_lea.sflag [#allocation7], 1
    %18 = vsyncpa %s17, 0
    %19 = vsyncpa [#allocation10], 0
    %s20 = scalar_lea.sflag [#allocation10], 1
    %21 = vsyncpa %s20, 0
    %22 = vsyncpa [#allocation13], 0
    loop: start=0, step=1, limit=4
    $region2: #{tpu_custom_call.1} parent=1 // loop_pre_header
      _
    $region3: #{tpu_custom_call.1} parent=1 // loop_header
      %s24 = sphi 0, %s28
      %p25 = scmp.ge.s32.totalorder %s24, 4
      %s32 = sphi 0, %s32
      %s34 = sphi 0, %s32
      %s35 = sphi 0, %s34
      %s49 = sphi 0, %s35
      %s55 = sphi 0, %s57
      %s58 = sphi 0, %s55
      %s59 = sphi 0, %s58
      %s75 = sphi 0, %s59
      %s81 = sphi 0, %s83
      %s84 = sphi 0, %s81
      %s85 = sphi 0, %s84
      %s101 = sphi 0, %s85
      %s107 = sphi 0, %s109
      %s110 = sphi 0, %s107
      %s111 = sphi 0, %s110
      %s127 = sphi 0, %s111
      %s131 = sphi 0, %s131
      %s133 = sphi 0, %s131
      %s134 = sphi 0, %s133
      %s148 = sphi 0, %s134
      %s152 = sphi 0, %s152
      %s154 = sphi 0, %s152
      %s155 = sphi 0, %s154
      %s169 = sphi 0, %s155
      %s173 = sphi 0, %s173
      %s175 = sphi 0, %s173
      %s176 = sphi 0, %s175
      %s190 = sphi 0, %s176
      %s194 = sphi 0, %s194
      %s196 = sphi 0, %s194
      %s197 = sphi 0, %s196
      %s211 = sphi 0, %s197
      %s215 = sphi 0, %s215
      %s217 = sphi 0, %s215
      %s218 = sphi 0, %s217
      %s232 = sphi 0, %s218
    $region4: #{tpu_custom_call.1} parent=1 // loop_header_branch
      %27 = sbr.rel (%p25) target = $region8
    $region5: #{tpu_custom_call.1} parent=1 // loop_body
      %s29 = ssub.s32 %s24, 1
      %s30 = ssub.s32 %s24, 2
      %s31 = sadd.s32 %s24, 1
      %s33 = sadd.s32 %s32, 1
      %p36 = scmp.eq.s32.totalorder %s24, 1
      %p37 = scmp.ne.s32.totalorder %s32, %s34
      %p38 = scmp.eq.s32.totalorder %s24, 0
      %p39 = por %p37, %p38
      %p40 = scmp.ne.s32.totalorder %s32, %s34
      %p41 = scmp.eq.s32.totalorder %s29, 1
      %p42 = por %p40, %p41
      %p43 = scmp.ne.s32.totalorder %s34, %s35
      %p44 = scmp.eq.s32.totalorder %s29, 0
      %p45 = por %p43, %p44
      %p46 = scmp.ne.s32.totalorder %s34, %s35
      %p47 = scmp.eq.s32.totalorder %s30, 1
      %p48 = por %p46, %p47
      %p50 = scmp.ne.s32.totalorder %s35, %s49
      %p51 = scmp.eq.s32.totalorder %s30, 0
      %p52 = por %p50, %p51
      %s53 = ssub.s32 %s24, %s31
      %p54 = scmp.eq.s32.totalorder %s53, 0
      %s56 = sadd.s32 %s55, 1
      %s57 = scalar_select %p54, %s55, %s56
      %p60 = pneg %p54
      %p61 = scmp.eq.s32.totalorder %s24, 1
      %p62 = por %p60, %p61
      %p63 = scmp.ne.s32.totalorder %s55, %s58
      %p64 = scmp.eq.s32.totalorder %s24, 0
      %p65 = por %p63, %p64
      %p66 = scmp.ne.s32.totalorder %s55, %s58
      %p67 = scmp.eq.s32.totalorder %s29, 1
      %p68 = por %p66, %p67
      %p69 = scmp.ne.s32.totalorder %s58, %s59
      %p70 = scmp.eq.s32.totalorder %s29, 0
      %p71 = por %p69, %p70
      %p72 = scmp.ne.s32.totalorder %s58, %s59
      %p73 = scmp.eq.s32.totalorder %s30, 1
      %p74 = por %p72, %p73
      %p76 = scmp.ne.s32.totalorder %s59, %s75
      %p77 = scmp.eq.s32.totalorder %s30, 0
      %p78 = por %p76, %p77
      %s79 = ssub.s32 %s24, %s31
      %p80 = scmp.eq.s32.totalorder %s79, 0
      %s82 = sadd.s32 %s81, 1
      %s83 = scalar_select %p80, %s81, %s82
      %p86 = pneg %p80
      %p87 = scmp.eq.s32.totalorder %s24, 1
      %p88 = por %p86, %p87
      %p89 = scmp.ne.s32.totalorder %s81, %s84
      %p90 = scmp.eq.s32.totalorder %s24, 0
      %p91 = por %p89, %p90
      %p92 = scmp.ne.s32.totalorder %s81, %s84
      %p93 = scmp.eq.s32.totalorder %s29, 1
      %p94 = por %p92, %p93
      %p95 = scmp.ne.s32.totalorder %s84, %s85
      %p96 = scmp.eq.s32.totalorder %s29, 0
      %p97 = por %p95, %p96
      %p98 = scmp.ne.s32.totalorder %s84, %s85
      %p99 = scmp.eq.s32.totalorder %s30, 1
      %p100 = por %p98, %p99
      %p102 = scmp.ne.s32.totalorder %s85, %s101
      %p103 = scmp.eq.s32.totalorder %s30, 0
      %p104 = por %p102, %p103
      %s105 = ssub.s32 %s24, %s31
      %p106 = scmp.eq.s32.totalorder %s105, 0
      %s108 = sadd.s32 %s107, 1
      %s109 = scalar_select %p106, %s107, %s108
      %p112 = pneg %p106
      %p113 = scmp.eq.s32.totalorder %s24, 1
      %p114 = por %p112, %p113
      %p115 = scmp.ne.s32.totalorder %s107, %s110
      %p116 = scmp.eq.s32.totalorder %s24, 0
      %p117 = por %p115, %p116
      %p118 = scmp.ne.s32.totalorder %s107, %s110
      %p119 = scmp.eq.s32.totalorder %s29, 1
      %p120 = por %p118, %p119
      %p121 = scmp.ne.s32.totalorder %s110, %s111
      %p122 = scmp.eq.s32.totalorder %s29, 0
      %p123 = por %p121, %p122
      %p124 = scmp.ne.s32.totalorder %s110, %s111
      %p125 = scmp.eq.s32.totalorder %s30, 1
      %p126 = por %p124, %p125
      %p128 = scmp.ne.s32.totalorder %s111, %s127
      %p129 = scmp.eq.s32.totalorder %s30, 0
      %p130 = por %p128, %p129
      %s132 = sadd.s32 %s131, 1
      %p135 = scmp.eq.s32.totalorder %s24, 1
      %p136 = scmp.ne.s32.totalorder %s131, %s133
      %p137 = scmp.eq.s32.totalorder %s24, 0
      %p138 = por %p136, %p137
      %p139 = scmp.ne.s32.totalorder %s131, %s133
      %p140 = scmp.eq.s32.totalorder %s29, 1
      %p141 = por %p139, %p140
      %p142 = scmp.ne.s32.totalorder %s133, %s134
      %p143 = scmp.eq.s32.totalorder %s29, 0
      %p144 = por %p142, %p143
      %p145 = scmp.ne.s32.totalorder %s133, %s134
      %p146 = scmp.eq.s32.totalorder %s30, 1
      %p147 = por %p145, %p146
      %p149 = scmp.ne.s32.totalorder %s134, %s148
      %p150 = scmp.eq.s32.totalorder %s30, 0
      %p151 = por %p149, %p150
      %s153 = sadd.s32 %s152, 1
      %p156 = scmp.eq.s32.totalorder %s24, 1
      %p157 = scmp.ne.s32.totalorder %s152, %s154
      %p158 = scmp.eq.s32.totalorder %s24, 0
      %p159 = por %p157, %p158
      %p160 = scmp.ne.s32.totalorder %s152, %s154
      %p161 = scmp.eq.s32.totalorder %s29, 1
      %p162 = por %p160, %p161
      %p163 = scmp.ne.s32.totalorder %s154, %s155
      %p164 = scmp.eq.s32.totalorder %s29, 0
      %p165 = por %p163, %p164
      %p166 = scmp.ne.s32.totalorder %s154, %s155
      %p167 = scmp.eq.s32.totalorder %s30, 1
      %p168 = por %p166, %p167
      %p170 = scmp.ne.s32.totalorder %s155, %s169
      %p171 = scmp.eq.s32.totalorder %s30, 0
      %p172 = por %p170, %p171
      %s174 = sadd.s32 %s173, 1
      %p177 = scmp.eq.s32.totalorder %s24, 1
      %p178 = scmp.ne.s32.totalorder %s173, %s175
      %p179 = scmp.eq.s32.totalorder %s24, 0
      %p180 = por %p178, %p179
      %p181 = scmp.ne.s32.totalorder %s173, %s175
      %p182 = scmp.eq.s32.totalorder %s29, 1
      %p183 = por %p181, %p182
      %p184 = scmp.ne.s32.totalorder %s175, %s176
      %p185 = scmp.eq.s32.totalorder %s29, 0
      %p186 = por %p184, %p185
      %p187 = scmp.ne.s32.totalorder %s175, %s176
      %p188 = scmp.eq.s32.totalorder %s30, 1
      %p189 = por %p187, %p188
      %p191 = scmp.ne.s32.totalorder %s176, %s190
      %p192 = scmp.eq.s32.totalorder %s30, 0
      %p193 = por %p191, %p192
      %s195 = sadd.s32 %s194, 1
      %p198 = scmp.eq.s32.totalorder %s24, 1
      %p199 = scmp.ne.s32.totalorder %s194, %s196
      %p200 = scmp.eq.s32.totalorder %s24, 0
      %p201 = por %p199, %p200
      %p202 = scmp.ne.s32.totalorder %s194, %s196
      %p203 = scmp.eq.s32.totalorder %s29, 1
      %p204 = por %p202, %p203
      %p205 = scmp.ne.s32.totalorder %s196, %s197
      %p206 = scmp.eq.s32.totalorder %s29, 0
      %p207 = por %p205, %p206
      %p208 = scmp.ne.s32.totalorder %s196, %s197
      %p209 = scmp.eq.s32.totalorder %s30, 1
      %p210 = por %p208, %p209
      %p212 = scmp.ne.s32.totalorder %s197, %s211
      %p213 = scmp.eq.s32.totalorder %s30, 0
      %p214 = por %p212, %p213
      %s216 = sadd.s32 %s215, 1
      %p219 = scmp.eq.s32.totalorder %s24, 1
      %p220 = scmp.ne.s32.totalorder %s215, %s217
      %p221 = scmp.eq.s32.totalorder %s24, 0
      %p222 = por %p220, %p221
      %p223 = scmp.ne.s32.totalorder %s215, %s217
      %p224 = scmp.eq.s32.totalorder %s29, 1
      %p225 = por %p223, %p224
      %p226 = scmp.ne.s32.totalorder %s217, %s218
      %p227 = scmp.eq.s32.totalorder %s29, 0
      %p228 = por %p226, %p227
      %p229 = scmp.ne.s32.totalorder %s217, %s218
      %p230 = scmp.eq.s32.totalorder %s30, 1
      %p231 = por %p229, %p230
      %p233 = scmp.ne.s32.totalorder %s218, %s232
      %p234 = scmp.eq.s32.totalorder %s30, 0
      %p235 = por %p233, %p234
      %p236 = scmp.le.s32.totalorder 1, %s24
      %p237 = scmp.lt.s32.totalorder %s24, 3
      %p238 = pnand %p236, %p237
      %p239 = pneg %p238
      // Predicated region
      $region9: #{tpu_custom_call.1} parent=5 // pred_check
        _
      $region10: #{tpu_custom_call.1} parent=5 // pred_check_branch
        %241 = sbr.rel (%p238) target = $region12
      $region11: #{tpu_custom_call.1} parent=5 // pred_region
        %s242 = ssub.s32 %s24, 1
        // Predicated region
        $region13: #{tpu_custom_call.1} parent=11 // pred_check
          %p243 = pneg %p45
        $region14: #{tpu_custom_call.1} parent=11 // pred_check_branch
          %245 = sbr.rel (%p243) target = $region16
        $region15: #{tpu_custom_call.1} parent=11 // pred_region
          %s247 = ssub.s32 2048, 2048
          %248 = vsyncadd [#allocation5], %s247
          %s249 = sshll.u32 [#allocation4], 4
          %s250 = int_to_ptr.vmem [resolvable:$true] %s249
          %255 = dma.hbm_to_vmem [thread:$0]  %s0, 2048, %s250, [#allocation5], 512, 512, 32
        $region16: #{tpu_custom_call.1} parent=11 // pred_fallthru
          _
        // Predicated region
        $region17: #{tpu_custom_call.1} parent=11 // pred_check
          %p256 = pneg %p144
        $region18: #{tpu_custom_call.1} parent=11 // pred_check_branch
          %258 = sbr.rel (%p256) target = $region20
        $region19: #{tpu_custom_call.1} parent=11 // pred_region
          %s260 = ssub.s32 16, 16
          %261 = vsyncadd [#allocation10], %s260
          %s263 = sshll.u32 [#allocation11], 4
          %s264 = int_to_ptr.vmem [resolvable:$true] %s263
          %266 = dma.hbm_to_vmem [thread:$0]  %s4, 16, %s264, [#allocation10]
        $region20: #{tpu_custom_call.1} parent=11 // pred_fallthru
          _
        // Predicated region
        $region21: #{tpu_custom_call.1} parent=11 // pred_check
          %p267 = pneg %p165
        $region22: #{tpu_custom_call.1} parent=11 // pred_check_branch
          %269 = sbr.rel (%p267) target = $region24
        $region23: #{tpu_custom_call.1} parent=11 // pred_region
          %s271 = ssub.s32 16, 16
          %272 = vsyncadd [#allocation13], %s271
          %s274 = sshll.u32 [#allocation12], 4
          %s275 = int_to_ptr.vmem [resolvable:$true] %s274
          %277 = dma.hbm_to_vmem [thread:$0]  %s5, 16, %s275, [#allocation13]
        $region24: #{tpu_custom_call.1} parent=11 // pred_fallthru
          _
        // Predicated region
        $region25: #{tpu_custom_call.1} parent=11 // pred_check
          %p278 = pneg %p186
        $region26: #{tpu_custom_call.1} parent=11 // pred_check_branch
          %280 = sbr.rel (%p278) target = $region28
        $region27: #{tpu_custom_call.1} parent=11 // pred_region
          _
        $region28: #{tpu_custom_call.1} parent=11 // pred_fallthru
          _
        // Predicated region
        $region29: #{tpu_custom_call.1} parent=11 // pred_check
          %p281 = pneg %p207
        $region30: #{tpu_custom_call.1} parent=11 // pred_check_branch
          %283 = sbr.rel (%p281) target = $region32
        $region31: #{tpu_custom_call.1} parent=11 // pred_region
          %s285 = ssub.s32 32, 32
          %286 = vsyncadd [#allocation13], %s285
          %s288 = sshll.u32 [#allocation14], 4
          %s289 = int_to_ptr.vmem [resolvable:$true] %s288
          %291 = dma.hbm_to_vmem [thread:$0]  %s7, 32, %s289, [#allocation13]
        $region32: #{tpu_custom_call.1} parent=11 // pred_fallthru
          _
      $region12: #{tpu_custom_call.1} parent=5 // pred_fallthru
        _
      %p292 = scmp.lt.s32.totalorder %s24, 2
      // Predicated region
      $region33: #{tpu_custom_call.1} parent=5 // pred_check
        %p293 = pneg %p292
      $region34: #{tpu_custom_call.1} parent=5 // pred_check_branch
        %295 = sbr.rel (%p293) target = $region36
      $region35: #{tpu_custom_call.1} parent=5 // pred_region
        // Predicated region
        $region37: #{tpu_custom_call.1} parent=35 // pred_check
          %p296 = pneg %p65
        $region38: #{tpu_custom_call.1} parent=35 // pred_check_branch
          %298 = sbr.rel (%p296) target = $region40
        $region39: #{tpu_custom_call.1} parent=35 // pred_region
          %s299 = sand.u32 %s24, 1
          %s300 = scalar_lea.sflag [#allocation7], %s299
          %s301 = sand.u32 %s55, 1
          %s302 = smul.addr %s301, 2048
          %s303 = scalar_lea.vmem [#allocation6], %s302
          %s304 = smul.u32 4, %s24
          %s306 = ssub.s32 32768, 32768
          %307 = vsyncadd %s300, %s306
          %s308 = smul.addr %s304, 64
          %s309 = scalar_lea.hbm %s1, %s308
          %s310 = sshll.u32 %s303, 4
          %s311 = int_to_ptr.vmem [resolvable:$true] %s310
          %316 = dma.hbm_to_vmem [thread:$0]  %s309, 32768, %s311, %s300, 512, 256, 16
        $region40: #{tpu_custom_call.1} parent=35 // pred_fallthru
          _
        // Predicated region
        $region41: #{tpu_custom_call.1} parent=35 // pred_check
          %p317 = pneg %p91
        $region42: #{tpu_custom_call.1} parent=35 // pred_check_branch
          %319 = sbr.rel (%p317) target = $region44
        $region43: #{tpu_custom_call.1} parent=35 // pred_region
          %s320 = sand.u32 %s24, 1
          %s321 = scalar_lea.sflag [#allocation7], %s320
          %s322 = sand.u32 %s81, 1
          %s323 = smul.addr %s322, 4
          %s324 = scalar_lea.vmem [#allocation8], %s323
          %s325 = smul.u32 4, %s24
          %s327 = ssub.s32 64, 64
          %328 = vsyncadd %s321, %s327
          %s329 = smul.addr %s325, 16
          %s330 = scalar_lea.hbm %s2, %s329
          %s332 = sshll.u32 %s324, 4
          %s333 = int_to_ptr.vmem [resolvable:$true] %s332
          %335 = dma.hbm_to_vmem [thread:$0]  %s330, 64, %s333, %s321
        $region44: #{tpu_custom_call.1} parent=35 // pred_fallthru
          _
        // Predicated region
        $region45: #{tpu_custom_call.1} parent=35 // pred_check
          %p336 = pneg %p117
        $region46: #{tpu_custom_call.1} parent=35 // pred_check_branch
          %338 = sbr.rel (%p336) target = $region48
        $region47: #{tpu_custom_call.1} parent=35 // pred_region
          %s339 = sand.u32 %s24, 1
          %s340 = scalar_lea.sflag [#allocation10], %s339
          %s341 = sand.u32 %s107, 1
          %s342 = smul.addr %s341, 256
          %s343 = scalar_lea.vmem [#allocation9], %s342
          %s344 = smul.u32 64, %s24
          %s346 = ssub.s32 4096, 4096
          %347 = vsyncadd %s340, %s346
          %s348 = smul.addr %s344, 64
          %s349 = scalar_lea.hbm %s3, %s348
          %s350 = sshll.u32 %s343, 4
          %s351 = int_to_ptr.vmem [resolvable:$true] %s350
          %356 = dma.hbm_to_vmem [thread:$0]  %s349, 4096, %s351, %s340, 64, 64, 4
        $region48: #{tpu_custom_call.1} parent=35 // pred_fallthru
          _
      $region36: #{tpu_custom_call.1} parent=5 // pred_fallthru
        _
      %p357 = scmp.le.s32.totalorder 1, %s24
      %p358 = scmp.lt.s32.totalorder %s24, 3
      %p359 = pnand %p357, %p358
      %p360 = pneg %p359
      // Predicated region
      $region49: #{tpu_custom_call.1} parent=5 // pred_check
        _
      $region50: #{tpu_custom_call.1} parent=5 // pred_check_branch
        %362 = sbr.rel (%p359) target = $region52
      $region51: #{tpu_custom_call.1} parent=5 // pred_region
        %s363 = ssub.s32 %s24, 1
        // Predicated region
        $region53: #{tpu_custom_call.1} parent=51 // pred_check
          %p364 = pneg %p45
        $region54: #{tpu_custom_call.1} parent=51 // pred_check_branch
          %366 = sbr.rel (%p364) target = $region56
        $region55: #{tpu_custom_call.1} parent=51 // pred_region
          %367 = dma.done [#allocation5], 2048
        $region56: #{tpu_custom_call.1} parent=51 // pred_fallthru
          _
        %s368 = sand.u32 %s29, 1
        %s369 = scalar_lea.sflag [#allocation7], %s368
        %s370 = sand.u32 %s58, 1
        %s371 = smul.addr %s370, 2048
        %s372 = scalar_lea.vmem [#allocation6], %s371
        // Predicated region
        $region57: #{tpu_custom_call.1} parent=51 // pred_check
          %p373 = pneg %p71
        $region58: #{tpu_custom_call.1} parent=51 // pred_check_branch
          %375 = sbr.rel (%p373) target = $region60
        $region59: #{tpu_custom_call.1} parent=51 // pred_region
          %376 = dma.done %s369, 32768
        $region60: #{tpu_custom_call.1} parent=51 // pred_fallthru
          _
        %s377 = sand.u32 %s29, 1
        %s378 = scalar_lea.sflag [#allocation7], %s377
        %s379 = sand.u32 %s84, 1
        %s380 = smul.addr %s379, 4
        %s381 = scalar_lea.vmem [#allocation8], %s380
        // Predicated region
        $region61: #{tpu_custom_call.1} parent=51 // pred_check
          %p382 = pneg %p97
        $region62: #{tpu_custom_call.1} parent=51 // pred_check_branch
          %384 = sbr.rel (%p382) target = $region64
        $region63: #{tpu_custom_call.1} parent=51 // pred_region
          %385 = dma.done %s378, 64
        $region64: #{tpu_custom_call.1} parent=51 // pred_fallthru
          _
        %s386 = sand.u32 %s29, 1
        %s387 = scalar_lea.sflag [#allocation10], %s386
        %s388 = sand.u32 %s110, 1
        %s389 = smul.addr %s388, 256
        %s390 = scalar_lea.vmem [#allocation9], %s389
        // Predicated region
        $region65: #{tpu_custom_call.1} parent=51 // pred_check
          %p391 = pneg %p123
        $region66: #{tpu_custom_call.1} parent=51 // pred_check_branch
          %393 = sbr.rel (%p391) target = $region68
        $region67: #{tpu_custom_call.1} parent=51 // pred_region
          %394 = dma.done %s387, 4096
        $region68: #{tpu_custom_call.1} parent=51 // pred_fallthru
          _
        // Predicated region
        $region69: #{tpu_custom_call.1} parent=51 // pred_check
          %p395 = pneg %p144
        $region70: #{tpu_custom_call.1} parent=51 // pred_check_branch
          %397 = sbr.rel (%p395) target = $region72
        $region71: #{tpu_custom_call.1} parent=51 // pred_region
          %398 = dma.done [#allocation10], 16
        $region72: #{tpu_custom_call.1} parent=51 // pred_fallthru
          _
        // Predicated region
        $region73: #{tpu_custom_call.1} parent=51 // pred_check
          %p399 = pneg %p165
        $region74: #{tpu_custom_call.1} parent=51 // pred_check_branch
          %401 = sbr.rel (%p399) target = $region76
        $region75: #{tpu_custom_call.1} parent=51 // pred_region
          %402 = dma.done [#allocation13], 16
        $region76: #{tpu_custom_call.1} parent=51 // pred_fallthru
          _
        // Predicated region
        $region77: #{tpu_custom_call.1} parent=51 // pred_check
          %p403 = pneg %p207
        $region78: #{tpu_custom_call.1} parent=51 // pred_check_branch
          %405 = sbr.rel (%p403) target = $region80
        $region79: #{tpu_custom_call.1} parent=51 // pred_region
          %406 = dma.done [#allocation13], 32
        $region80: #{tpu_custom_call.1} parent=51 // pred_fallthru
          _
        %p407 = pneg %p45
        %p408 = pneg %p42
        %s409 = sand.u32 %s29, 1
        %s410 = scalar_lea.sflag [#allocation7], %s409
        %s411 = sand.u32 %s58, 1
        %s412 = smul.addr %s411, 2048
        %s413 = scalar_lea.vmem [#allocation6], %s412
        %p414 = pneg %p71
        %p415 = pneg %p68
        %s416 = sand.u32 %s29, 1
        %s417 = scalar_lea.sflag [#allocation7], %s416
        %s418 = sand.u32 %s84, 1
        %s419 = smul.addr %s418, 4
        %s420 = scalar_lea.vmem [#allocation8], %s419
        %p421 = pneg %p97
        %p422 = pneg %p94
        %s423 = sand.u32 %s29, 1
        %s424 = scalar_lea.sflag [#allocation10], %s423
        %s425 = sand.u32 %s110, 1
        %s426 = smul.addr %s425, 256
        %s427 = scalar_lea.vmem [#allocation9], %s426
        %p428 = pneg %p123
        %p429 = pneg %p120
        %p430 = pneg %p144
        %p431 = pneg %p141
        %p432 = pneg %p165
        %p433 = pneg %p162
        %p434 = pneg %p186
        %p435 = pneg %p183
        %p436 = pneg %p207
        %p437 = pneg %p204
        %p438 = pneg %p228
        %p439 = pneg %p225
        %s440 = smul.u32 4, %s29
        %s441 = smul.u32 4, %s29
        %s442 = smul.u32 64, %s29
        %p444 = scmp.eq.s32.totalorder %s29, 0
        // Predicated region
        $region81: #{tpu_custom_call.1} parent=51 // pred_check
          %p445 = pneg %p444
        $region82: #{tpu_custom_call.1} parent=51 // pred_check_branch
          %447 = sbr.rel (%p445) target = $region84
        $region83: #{tpu_custom_call.1} parent=51 // pred_region
          %448 = vst [vmem:[#allocation2] sm:$0xff] 0.0
          %449 = vst [vmem:[#allocation2 + $0x8] sm:$0xff] 0.0
          %450 = vst [vmem:[#allocation2 + $0x10] sm:$0xff] 0.0
          %451 = vst [vmem:[#allocation2 + $0x18] sm:$0xff] 0.0
        $region84: #{tpu_custom_call.1} parent=51 // pred_fallthru
          _
        %v452 = vld [vmem:[#allocation4] sm:$0xff]
        %v453 = vld [vmem:[#allocation4 + $0x8] sm:$0xff]
        %v454 = vld [vmem:[#allocation4 + $0x10] sm:$0xff]
        %v455 = vld [vmem:[#allocation4 + $0x18] sm:$0xff]
        %v456 = vld [vmem:[#allocation4 + $0x20] sm:$0xff]
        %v457 = vld [vmem:[#allocation4 + $0x28] sm:$0xff]
        %v458 = vld [vmem:[#allocation4 + $0x30] sm:$0xff]
        %v459 = vld [vmem:[#allocation4 + $0x38] sm:$0xff]
        %v460 = vld [vmem:[#allocation4 + $0x40] sm:$0xff]
        %v461 = vld [vmem:[#allocation4 + $0x48] sm:$0xff]
        %v462 = vld [vmem:[#allocation4 + $0x50] sm:$0xff]
        %v463 = vld [vmem:[#allocation4 + $0x58] sm:$0xff]
        %v464 = vld [vmem:[#allocation4 + $0x60] sm:$0xff]
        %v465 = vld [vmem:[#allocation4 + $0x68] sm:$0xff]
        %v466 = vld [vmem:[#allocation4 + $0x70] sm:$0xff]
        %v467 = vld [vmem:[#allocation4 + $0x78] sm:$0xff]
        %v468 = vld [vmem:[%s372] sm:$0xff]
        %v469 = vld [vmem:[%s372 + $0x8] sm:$0xff]
        %v470 = vld [vmem:[%s372 + $0x10] sm:$0xff]
        %v471 = vld [vmem:[%s372 + $0x18] sm:$0xff]
        %v472 = vld [vmem:[%s372 + $0x20] sm:$0xff]
        %v473 = vld [vmem:[%s372 + $0x28] sm:$0xff]
        %v474 = vld [vmem:[%s372 + $0x30] sm:$0xff]
        %v475 = vld [vmem:[%s372 + $0x38] sm:$0xff]
        %v476 = vld [vmem:[%s372 + $0x40] sm:$0xff]
        %v477 = vld [vmem:[%s372 + $0x48] sm:$0xff]
        %v478 = vld [vmem:[%s372 + $0x50] sm:$0xff]
        %v479 = vld [vmem:[%s372 + $0x58] sm:$0xff]
        %v480 = vld [vmem:[%s372 + $0x60] sm:$0xff]
        %v481 = vld [vmem:[%s372 + $0x68] sm:$0xff]
        %v482 = vld [vmem:[%s372 + $0x70] sm:$0xff]
        %v483 = vld [vmem:[%s372 + $0x78] sm:$0xff]
        %v484 = vld [vmem:[%s372 + $0x80] sm:$0xff]
        %v485 = vld [vmem:[%s372 + $0x88] sm:$0xff]
        %v486 = vld [vmem:[%s372 + $0x90] sm:$0xff]
        %v487 = vld [vmem:[%s372 + $0x98] sm:$0xff]
        %v488 = vld [vmem:[%s372 + $0xa0] sm:$0xff]
        %v489 = vld [vmem:[%s372 + $0xa8] sm:$0xff]
        %v490 = vld [vmem:[%s372 + $0xb0] sm:$0xff]
        %v491 = vld [vmem:[%s372 + $0xb8] sm:$0xff]
        %v492 = vld [vmem:[%s372 + $0xc0] sm:$0xff]
        %v493 = vld [vmem:[%s372 + $0xc8] sm:$0xff]
        %v494 = vld [vmem:[%s372 + $0xd0] sm:$0xff]
        %v495 = vld [vmem:[%s372 + $0xd8] sm:$0xff]
        %v496 = vld [vmem:[%s372 + $0xe0] sm:$0xff]
        %v497 = vld [vmem:[%s372 + $0xe8] sm:$0xff]
        %v498 = vld [vmem:[%s372 + $0xf0] sm:$0xff]
        %v499 = vld [vmem:[%s372 + $0xf8] sm:$0xff]
        %v500 = vld [vmem:[%s372 + $0x100] sm:$0xff]
        %v501 = vld [vmem:[%s372 + $0x108] sm:$0xff]
        %v502 = vld [vmem:[%s372 + $0x110] sm:$0xff]
        %v503 = vld [vmem:[%s372 + $0x118] sm:$0xff]
        %v504 = vld [vmem:[%s372 + $0x120] sm:$0xff]
        %v505 = vld [vmem:[%s372 + $0x128] sm:$0xff]
        %v506 = vld [vmem:[%s372 + $0x130] sm:$0xff]
        %v507 = vld [vmem:[%s372 + $0x138] sm:$0xff]
        %v508 = vld [vmem:[%s372 + $0x140] sm:$0xff]
        %v509 = vld [vmem:[%s372 + $0x148] sm:$0xff]
        %v510 = vld [vmem:[%s372 + $0x150] sm:$0xff]
        %v511 = vld [vmem:[%s372 + $0x158] sm:$0xff]
        %v512 = vld [vmem:[%s372 + $0x160] sm:$0xff]
        %v513 = vld [vmem:[%s372 + $0x168] sm:$0xff]
        %v514 = vld [vmem:[%s372 + $0x170] sm:$0xff]
        %v515 = vld [vmem:[%s372 + $0x178] sm:$0xff]
        %v516 = vld [vmem:[%s372 + $0x180] sm:$0xff]
        %v517 = vld [vmem:[%s372 + $0x188] sm:$0xff]
        %v518 = vld [vmem:[%s372 + $0x190] sm:$0xff]
        %v519 = vld [vmem:[%s372 + $0x198] sm:$0xff]
        %v520 = vld [vmem:[%s372 + $0x1a0] sm:$0xff]
        %v521 = vld [vmem:[%s372 + $0x1a8] sm:$0xff]
        %v522 = vld [vmem:[%s372 + $0x1b0] sm:$0xff]
        %v523 = vld [vmem:[%s372 + $0x1b8] sm:$0xff]
        %v524 = vld [vmem:[%s372 + $0x1c0] sm:$0xff]
        %v525 = vld [vmem:[%s372 + $0x1c8] sm:$0xff]
        %v526 = vld [vmem:[%s372 + $0x1d0] sm:$0xff]
        %v527 = vld [vmem:[%s372 + $0x1d8] sm:$0xff]
        %v528 = vld [vmem:[%s372 + $0x1e0] sm:$0xff]
        %v529 = vld [vmem:[%s372 + $0x1e8] sm:$0xff]
        %v530 = vld [vmem:[%s372 + $0x1f0] sm:$0xff]
        %v531 = vld [vmem:[%s372 + $0x1f8] sm:$0xff]
        %v532 = vld [vmem:[%s372 + $0x200] sm:$0xff]
        %v533 = vld [vmem:[%s372 + $0x208] sm:$0xff]
        %v534 = vld [vmem:[%s372 + $0x210] sm:$0xff]
        %v535 = vld [vmem:[%s372 + $0x218] sm:$0xff]
        %v536 = vld [vmem:[%s372 + $0x220] sm:$0xff]
        %v537 = vld [vmem:[%s372 + $0x228] sm:$0xff]
        %v538 = vld [vmem:[%s372 + $0x230] sm:$0xff]
        %v539 = vld [vmem:[%s372 + $0x238] sm:$0xff]
        %v540 = vld [vmem:[%s372 + $0x240] sm:$0xff]
        %v541 = vld [vmem:[%s372 + $0x248] sm:$0xff]
        %v542 = vld [vmem:[%s372 + $0x250] sm:$0xff]
        %v543 = vld [vmem:[%s372 + $0x258] sm:$0xff]
        %v544 = vld [vmem:[%s372 + $0x260] sm:$0xff]
        %v545 = vld [vmem:[%s372 + $0x268] sm:$0xff]
        %v546 = vld [vmem:[%s372 + $0x270] sm:$0xff]
        %v547 = vld [vmem:[%s372 + $0x278] sm:$0xff]
        %v548 = vld [vmem:[%s372 + $0x280] sm:$0xff]
        %v549 = vld [vmem:[%s372 + $0x288] sm:$0xff]
        %v550 = vld [vmem:[%s372 + $0x290] sm:$0xff]
        %v551 = vld [vmem:[%s372 + $0x298] sm:$0xff]
        %v552 = vld [vmem:[%s372 + $0x2a0] sm:$0xff]
        %v553 = vld [vmem:[%s372 + $0x2a8] sm:$0xff]
        %v554 = vld [vmem:[%s372 + $0x2b0] sm:$0xff]
        %v555 = vld [vmem:[%s372 + $0x2b8] sm:$0xff]
        %v556 = vld [vmem:[%s372 + $0x2c0] sm:$0xff]
        %v557 = vld [vmem:[%s372 + $0x2c8] sm:$0xff]
        %v558 = vld [vmem:[%s372 + $0x2d0] sm:$0xff]
        %v559 = vld [vmem:[%s372 + $0x2d8] sm:$0xff]
        %v560 = vld [vmem:[%s372 + $0x2e0] sm:$0xff]
        %v561 = vld [vmem:[%s372 + $0x2e8] sm:$0xff]
        %v562 = vld [vmem:[%s372 + $0x2f0] sm:$0xff]
        %v563 = vld [vmem:[%s372 + $0x2f8] sm:$0xff]
        %v564 = vld [vmem:[%s372 + $0x300] sm:$0xff]
        %v565 = vld [vmem:[%s372 + $0x308] sm:$0xff]
        %v566 = vld [vmem:[%s372 + $0x310] sm:$0xff]
        %v567 = vld [vmem:[%s372 + $0x318] sm:$0xff]
        %v568 = vld [vmem:[%s372 + $0x320] sm:$0xff]
        %v569 = vld [vmem:[%s372 + $0x328] sm:$0xff]
        %v570 = vld [vmem:[%s372 + $0x330] sm:$0xff]
        %v571 = vld [vmem:[%s372 + $0x338] sm:$0xff]
        %v572 = vld [vmem:[%s372 + $0x340] sm:$0xff]
        %v573 = vld [vmem:[%s372 + $0x348] sm:$0xff]
        %v574 = vld [vmem:[%s372 + $0x350] sm:$0xff]
        %v575 = vld [vmem:[%s372 + $0x358] sm:$0xff]
        %v576 = vld [vmem:[%s372 + $0x360] sm:$0xff]
        %v577 = vld [vmem:[%s372 + $0x368] sm:$0xff]
        %v578 = vld [vmem:[%s372 + $0x370] sm:$0xff]
        %v579 = vld [vmem:[%s372 + $0x378] sm:$0xff]
        %v580 = vld [vmem:[%s372 + $0x380] sm:$0xff]
        %v581 = vld [vmem:[%s372 + $0x388] sm:$0xff]
        %v582 = vld [vmem:[%s372 + $0x390] sm:$0xff]
        %v583 = vld [vmem:[%s372 + $0x398] sm:$0xff]
        %v584 = vld [vmem:[%s372 + $0x3a0] sm:$0xff]
        %v585 = vld [vmem:[%s372 + $0x3a8] sm:$0xff]
        %v586 = vld [vmem:[%s372 + $0x3b0] sm:$0xff]
        %v587 = vld [vmem:[%s372 + $0x3b8] sm:$0xff]
        %v588 = vld [vmem:[%s372 + $0x3c0] sm:$0xff]
        %v589 = vld [vmem:[%s372 + $0x3c8] sm:$0xff]
        %v590 = vld [vmem:[%s372 + $0x3d0] sm:$0xff]
        %v591 = vld [vmem:[%s372 + $0x3d8] sm:$0xff]
        %v592 = vld [vmem:[%s372 + $0x3e0] sm:$0xff]
        %v593 = vld [vmem:[%s372 + $0x3e8] sm:$0xff]
        %v594 = vld [vmem:[%s372 + $0x3f0] sm:$0xff]
        %v595 = vld [vmem:[%s372 + $0x3f8] sm:$0xff]
        %v596 = vld [vmem:[%s372 + $0x400] sm:$0xff]
        %v597 = vld [vmem:[%s372 + $0x408] sm:$0xff]
        %v598 = vld [vmem:[%s372 + $0x410] sm:$0xff]
        %v599 = vld [vmem:[%s372 + $0x418] sm:$0xff]
        %v600 = vld [vmem:[%s372 + $0x420] sm:$0xff]
        %v601 = vld [vmem:[%s372 + $0x428] sm:$0xff]
        %v602 = vld [vmem:[%s372 + $0x430] sm:$0xff]
        %v603 = vld [vmem:[%s372 + $0x438] sm:$0xff]
        %v604 = vld [vmem:[%s372 + $0x440] sm:$0xff]
        %v605 = vld [vmem:[%s372 + $0x448] sm:$0xff]
        %v606 = vld [vmem:[%s372 + $0x450] sm:$0xff]
        %v607 = vld [vmem:[%s372 + $0x458] sm:$0xff]
        %v608 = vld [vmem:[%s372 + $0x460] sm:$0xff]
        %v609 = vld [vmem:[%s372 + $0x468] sm:$0xff]
        %v610 = vld [vmem:[%s372 + $0x470] sm:$0xff]
        %v611 = vld [vmem:[%s372 + $0x478] sm:$0xff]
        %v612 = vld [vmem:[%s372 + $0x480] sm:$0xff]
        %v613 = vld [vmem:[%s372 + $0x488] sm:$0xff]
        %v614 = vld [vmem:[%s372 + $0x490] sm:$0xff]
        %v615 = vld [vmem:[%s372 + $0x498] sm:$0xff]
        %v616 = vld [vmem:[%s372 + $0x4a0] sm:$0xff]
        %v617 = vld [vmem:[%s372 + $0x4a8] sm:$0xff]
        %v618 = vld [vmem:[%s372 + $0x4b0] sm:$0xff]
        %v619 = vld [vmem:[%s372 + $0x4b8] sm:$0xff]
        %v620 = vld [vmem:[%s372 + $0x4c0] sm:$0xff]
        %v621 = vld [vmem:[%s372 + $0x4c8] sm:$0xff]
        %v622 = vld [vmem:[%s372 + $0x4d0] sm:$0xff]
        %v623 = vld [vmem:[%s372 + $0x4d8] sm:$0xff]
        %v624 = vld [vmem:[%s372 + $0x4e0] sm:$0xff]
        %v625 = vld [vmem:[%s372 + $0x4e8] sm:$0xff]
        %v626 = vld [vmem:[%s372 + $0x4f0] sm:$0xff]
        %v627 = vld [vmem:[%s372 + $0x4f8] sm:$0xff]
        %v628 = vld [vmem:[%s372 + $0x500] sm:$0xff]
        %v629 = vld [vmem:[%s372 + $0x508] sm:$0xff]
        %v630 = vld [vmem:[%s372 + $0x510] sm:$0xff]
        %v631 = vld [vmem:[%s372 + $0x518] sm:$0xff]
        %v632 = vld [vmem:[%s372 + $0x520] sm:$0xff]
        %v633 = vld [vmem:[%s372 + $0x528] sm:$0xff]
        %v634 = vld [vmem:[%s372 + $0x530] sm:$0xff]
        %v635 = vld [vmem:[%s372 + $0x538] sm:$0xff]
        %v636 = vld [vmem:[%s372 + $0x540] sm:$0xff]
        %v637 = vld [vmem:[%s372 + $0x548] sm:$0xff]
        %v638 = vld [vmem:[%s372 + $0x550] sm:$0xff]
        %v639 = vld [vmem:[%s372 + $0x558] sm:$0xff]
        %v640 = vld [vmem:[%s372 + $0x560] sm:$0xff]
        %v641 = vld [vmem:[%s372 + $0x568] sm:$0xff]
        %v642 = vld [vmem:[%s372 + $0x570] sm:$0xff]
        %v643 = vld [vmem:[%s372 + $0x578] sm:$0xff]
        %v644 = vld [vmem:[%s372 + $0x580] sm:$0xff]
        %v645 = vld [vmem:[%s372 + $0x588] sm:$0xff]
        %v646 = vld [vmem:[%s372 + $0x590] sm:$0xff]
        %v647 = vld [vmem:[%s372 + $0x598] sm:$0xff]
        %v648 = vld [vmem:[%s372 + $0x5a0] sm:$0xff]
        %v649 = vld [vmem:[%s372 + $0x5a8] sm:$0xff]
        %v650 = vld [vmem:[%s372 + $0x5b0] sm:$0xff]
        %v651 = vld [vmem:[%s372 + $0x5b8] sm:$0xff]
        %v652 = vld [vmem:[%s372 + $0x5c0] sm:$0xff]
        %v653 = vld [vmem:[%s372 + $0x5c8] sm:$0xff]
        %v654 = vld [vmem:[%s372 + $0x5d0] sm:$0xff]
        %v655 = vld [vmem:[%s372 + $0x5d8] sm:$0xff]
        %v656 = vld [vmem:[%s372 + $0x5e0] sm:$0xff]
        %v657 = vld [vmem:[%s372 + $0x5e8] sm:$0xff]
        %v658 = vld [vmem:[%s372 + $0x5f0] sm:$0xff]
        %v659 = vld [vmem:[%s372 + $0x5f8] sm:$0xff]
        %v660 = vld [vmem:[%s372 + $0x600] sm:$0xff]
        %v661 = vld [vmem:[%s372 + $0x608] sm:$0xff]
        %v662 = vld [vmem:[%s372 + $0x610] sm:$0xff]
        %v663 = vld [vmem:[%s372 + $0x618] sm:$0xff]
        %v664 = vld [vmem:[%s372 + $0x620] sm:$0xff]
        %v665 = vld [vmem:[%s372 + $0x628] sm:$0xff]
        %v666 = vld [vmem:[%s372 + $0x630] sm:$0xff]
        %v667 = vld [vmem:[%s372 + $0x638] sm:$0xff]
        %v668 = vld [vmem:[%s372 + $0x640] sm:$0xff]
        %v669 = vld [vmem:[%s372 + $0x648] sm:$0xff]
        %v670 = vld [vmem:[%s372 + $0x650] sm:$0xff]
        %v671 = vld [vmem:[%s372 + $0x658] sm:$0xff]
        %v672 = vld [vmem:[%s372 + $0x660] sm:$0xff]
        %v673 = vld [vmem:[%s372 + $0x668] sm:$0xff]
        %v674 = vld [vmem:[%s372 + $0x670] sm:$0xff]
        %v675 = vld [vmem:[%s372 + $0x678] sm:$0xff]
        %v676 = vld [vmem:[%s372 + $0x680] sm:$0xff]
        %v677 = vld [vmem:[%s372 + $0x688] sm:$0xff]
        %v678 = vld [vmem:[%s372 + $0x690] sm:$0xff]
        %v679 = vld [vmem:[%s372 + $0x698] sm:$0xff]
        %v680 = vld [vmem:[%s372 + $0x6a0] sm:$0xff]
        %v681 = vld [vmem:[%s372 + $0x6a8] sm:$0xff]
        %v682 = vld [vmem:[%s372 + $0x6b0] sm:$0xff]
        %v683 = vld [vmem:[%s372 + $0x6b8] sm:$0xff]
        %v684 = vld [vmem:[%s372 + $0x6c0] sm:$0xff]
        %v685 = vld [vmem:[%s372 + $0x6c8] sm:$0xff]
        %v686 = vld [vmem:[%s372 + $0x6d0] sm:$0xff]
        %v687 = vld [vmem:[%s372 + $0x6d8] sm:$0xff]
        %v688 = vld [vmem:[%s372 + $0x6e0] sm:$0xff]
        %v689 = vld [vmem:[%s372 + $0x6e8] sm:$0xff]
        %v690 = vld [vmem:[%s372 + $0x6f0] sm:$0xff]
        %v691 = vld [vmem:[%s372 + $0x6f8] sm:$0xff]
        %v692 = vld [vmem:[%s372 + $0x700] sm:$0xff]
        %v693 = vld [vmem:[%s372 + $0x708] sm:$0xff]
        %v694 = vld [vmem:[%s372 + $0x710] sm:$0xff]
        %v695 = vld [vmem:[%s372 + $0x718] sm:$0xff]
        %v696 = vld [vmem:[%s372 + $0x720] sm:$0xff]
        %v697 = vld [vmem:[%s372 + $0x728] sm:$0xff]
        %v698 = vld [vmem:[%s372 + $0x730] sm:$0xff]
        %v699 = vld [vmem:[%s372 + $0x738] sm:$0xff]
        %v700 = vld [vmem:[%s372 + $0x740] sm:$0xff]
        %v701 = vld [vmem:[%s372 + $0x748] sm:$0xff]
        %v702 = vld [vmem:[%s372 + $0x750] sm:$0xff]
        %v703 = vld [vmem:[%s372 + $0x758] sm:$0xff]
        %v704 = vld [vmem:[%s372 + $0x760] sm:$0xff]
        %v705 = vld [vmem:[%s372 + $0x768] sm:$0xff]
        %v706 = vld [vmem:[%s372 + $0x770] sm:$0xff]
        %v707 = vld [vmem:[%s372 + $0x778] sm:$0xff]
        %v708 = vld [vmem:[%s372 + $0x780] sm:$0xff]
        %v709 = vld [vmem:[%s372 + $0x788] sm:$0xff]
        %v710 = vld [vmem:[%s372 + $0x790] sm:$0xff]
        %v711 = vld [vmem:[%s372 + $0x798] sm:$0xff]
        %v712 = vld [vmem:[%s372 + $0x7a0] sm:$0xff]
        %v713 = vld [vmem:[%s372 + $0x7a8] sm:$0xff]
        %v714 = vld [vmem:[%s372 + $0x7b0] sm:$0xff]
        %v715 = vld [vmem:[%s372 + $0x7b8] sm:$0xff]
        %v716 = vld [vmem:[%s372 + $0x7c0] sm:$0xff]
        %v717 = vld [vmem:[%s372 + $0x7c8] sm:$0xff]
        %v718 = vld [vmem:[%s372 + $0x7d0] sm:$0xff]
        %v719 = vld [vmem:[%s372 + $0x7d8] sm:$0xff]
        %v720 = vld [vmem:[%s372 + $0x7e0] sm:$0xff]
        %v721 = vld [vmem:[%s372 + $0x7e8] sm:$0xff]
        %v722 = vld [vmem:[%s372 + $0x7f0] sm:$0xff]
        %v723 = vld [vmem:[%s372 + $0x7f8] sm:$0xff]
        %v724 = vld [vmem:[%s381] sm:$0xf]
        %v726 = vlaneseq
        %v727 = vshrl.u32 %v726, 7
        %v728 = vsub.s32 0, %v727
        %v729 = vrot.slane %v724, %v728
        %v730 = vlaneseq
        %v731 = vshrl.u32 %v730, 7
        %v732 = vsub.s32 1, %v731
        %v733 = vrot.slane %v724, %v732
        %v734 = vlaneseq
        %v735 = vshrl.u32 %v734, 7
        %v736 = vsub.s32 2, %v735
        %v737 = vrot.slane %v724, %v736
        %v738 = vlaneseq
        %v739 = vshrl.u32 %v738, 7
        %v740 = vsub.s32 3, %v739
        %v741 = vrot.slane %v724, %v740
        %v762 = vunpack.c.l.b16 %v452
        %v763 = vunpack.c.h.b16 %v452
        %v764 = vunpack.c.l.b16 %v453
        %v765 = vunpack.c.h.b16 %v453
        %v766 = vunpack.c.l.b16 %v454
        %v767 = vunpack.c.h.b16 %v454
        %v768 = vunpack.c.l.b16 %v455
        %v769 = vunpack.c.h.b16 %v455
        %v770 = vunpack.c.l.b16 %v456
        %v771 = vunpack.c.h.b16 %v456
        %v772 = vunpack.c.l.b16 %v457
        %v773 = vunpack.c.h.b16 %v457
        %v774 = vunpack.c.l.b16 %v458
        %v775 = vunpack.c.h.b16 %v458
        %v776 = vunpack.c.l.b16 %v459
        %v777 = vunpack.c.h.b16 %v459
        %v778 = vunpack.c.l.b16 %v460
        %v779 = vunpack.c.h.b16 %v460
        %v780 = vunpack.c.l.b16 %v461
        %v781 = vunpack.c.h.b16 %v461
        %v782 = vunpack.c.l.b16 %v462
        %v783 = vunpack.c.h.b16 %v462
        %v784 = vunpack.c.l.b16 %v463
        %v785 = vunpack.c.h.b16 %v463
        %v786 = vunpack.c.l.b16 %v464
        %v787 = vunpack.c.h.b16 %v464
        %v788 = vunpack.c.l.b16 %v465
        %v789 = vunpack.c.h.b16 %v465
        %v790 = vunpack.c.l.b16 %v466
        %v791 = vunpack.c.h.b16 %v466
        %v792 = vunpack.c.l.b16 %v467
        %v793 = vunpack.c.h.b16 %v467
        %v794 = vpack.c.b16 %v770, %v762
        %v795 = vpack.c.b16 %v771, %v763
        %v796 = vpack.c.b16 %v772, %v764
        %v797 = vpack.c.b16 %v773, %v765
        %v798 = vpack.c.b16 %v774, %v766
        %v799 = vpack.c.b16 %v775, %v767
        %v800 = vpack.c.b16 %v776, %v768
        %v801 = vpack.c.b16 %v777, %v769
        %v802 = vpack.c.b16 %v786, %v778
        %v803 = vpack.c.b16 %v787, %v779
        %v804 = vpack.c.b16 %v788, %v780
        %v805 = vpack.c.b16 %v789, %v781
        %v806 = vpack.c.b16 %v790, %v782
        %v807 = vpack.c.b16 %v791, %v783
        %v808 = vpack.c.b16 %v792, %v784
        %v809 = vpack.c.b16 %v793, %v785
        %v1082 = vunpack.c.l.b16 %v468
        %v1083 = vunpack.c.h.b16 %v468
        %v1084 = vunpack.c.l.b16 %v469
        %v1085 = vunpack.c.h.b16 %v469
        %v1086 = vunpack.c.l.b16 %v470
        %v1087 = vunpack.c.h.b16 %v470
        %v1088 = vunpack.c.l.b16 %v471
        %v1089 = vunpack.c.h.b16 %v471
        %v1090 = vunpack.c.l.b16 %v472
        %v1091 = vunpack.c.h.b16 %v472
        %v1092 = vunpack.c.l.b16 %v473
        %v1093 = vunpack.c.h.b16 %v473
        %v1094 = vunpack.c.l.b16 %v474
        %v1095 = vunpack.c.h.b16 %v474
        %v1096 = vunpack.c.l.b16 %v475
        %v1097 = vunpack.c.h.b16 %v475
        %v1098 = vunpack.c.l.b16 %v476
        %v1099 = vunpack.c.h.b16 %v476
        %v1100 = vunpack.c.l.b16 %v477
        %v1101 = vunpack.c.h.b16 %v477
        %v1102 = vunpack.c.l.b16 %v478
        %v1103 = vunpack.c.h.b16 %v478
        %v1104 = vunpack.c.l.b16 %v479
        %v1105 = vunpack.c.h.b16 %v479
        %v1106 = vunpack.c.l.b16 %v480
        %v1107 = vunpack.c.h.b16 %v480
        %v1108 = vunpack.c.l.b16 %v481
        %v1109 = vunpack.c.h.b16 %v481
        %v1110 = vunpack.c.l.b16 %v482
        %v1111 = vunpack.c.h.b16 %v482
        %v1112 = vunpack.c.l.b16 %v483
        %v1113 = vunpack.c.h.b16 %v483
        %v1114 = vunpack.c.l.b16 %v484
        %v1115 = vunpack.c.h.b16 %v484
        %v1116 = vunpack.c.l.b16 %v485
        %v1117 = vunpack.c.h.b16 %v485
        %v1118 = vunpack.c.l.b16 %v486
        %v1119 = vunpack.c.h.b16 %v486
        %v1120 = vunpack.c.l.b16 %v487
        %v1121 = vunpack.c.h.b16 %v487
        %v1122 = vunpack.c.l.b16 %v488
        %v1123 = vunpack.c.h.b16 %v488
        %v1124 = vunpack.c.l.b16 %v489
        %v1125 = vunpack.c.h.b16 %v489
        %v1126 = vunpack.c.l.b16 %v490
        %v1127 = vunpack.c.h.b16 %v490
        %v1128 = vunpack.c.l.b16 %v491
        %v1129 = vunpack.c.h.b16 %v491
        %v1130 = vunpack.c.l.b16 %v492
        %v1131 = vunpack.c.h.b16 %v492
        %v1132 = vunpack.c.l.b16 %v493
        %v1133 = vunpack.c.h.b16 %v493
        %v1134 = vunpack.c.l.b16 %v494
        %v1135 = vunpack.c.h.b16 %v494
        %v1136 = vunpack.c.l.b16 %v495
        %v1137 = vunpack.c.h.b16 %v495
        %v1138 = vunpack.c.l.b16 %v496
        %v1139 = vunpack.c.h.b16 %v496
        %v1140 = vunpack.c.l.b16 %v497
        %v1141 = vunpack.c.h.b16 %v497
        %v1142 = vunpack.c.l.b16 %v498
        %v1143 = vunpack.c.h.b16 %v498
        %v1144 = vunpack.c.l.b16 %v499
        %v1145 = vunpack.c.h.b16 %v499
        %v1146 = vunpack.c.l.b16 %v500
        %v1147 = vunpack.c.h.b16 %v500
        %v1148 = vunpack.c.l.b16 %v501
        %v1149 = vunpack.c.h.b16 %v501
        %v1150 = vunpack.c.l.b16 %v502
        %v1151 = vunpack.c.h.b16 %v502
        %v1152 = vunpack.c.l.b16 %v503
        %v1153 = vunpack.c.h.b16 %v503
        %v1154 = vunpack.c.l.b16 %v504
        %v1155 = vunpack.c.h.b16 %v504
        %v1156 = vunpack.c.l.b16 %v505
        %v1157 = vunpack.c.h.b16 %v505
        %v1158 = vunpack.c.l.b16 %v506
        %v1159 = vunpack.c.h.b16 %v506
        %v1160 = vunpack.c.l.b16 %v507
        %v1161 = vunpack.c.h.b16 %v507
        %v1162 = vunpack.c.l.b16 %v508
        %v1163 = vunpack.c.h.b16 %v508
        %v1164 = vunpack.c.l.b16 %v509
        %v1165 = vunpack.c.h.b16 %v509
        %v1166 = vunpack.c.l.b16 %v510
        %v1167 = vunpack.c.h.b16 %v510
        %v1168 = vunpack.c.l.b16 %v511
        %v1169 = vunpack.c.h.b16 %v511
        %v1170 = vunpack.c.l.b16 %v512
        %v1171 = vunpack.c.h.b16 %v512
        %v1172 = vunpack.c.l.b16 %v513
        %v1173 = vunpack.c.h.b16 %v513
        %v1174 = vunpack.c.l.b16 %v514
        %v1175 = vunpack.c.h.b16 %v514
        %v1176 = vunpack.c.l.b16 %v515
        %v1177 = vunpack.c.h.b16 %v515
        %v1178 = vunpack.c.l.b16 %v516
        %v1179 = vunpack.c.h.b16 %v516
        %v1180 = vunpack.c.l.b16 %v517
        %v1181 = vunpack.c.h.b16 %v517
        %v1182 = vunpack.c.l.b16 %v518
        %v1183 = vunpack.c.h.b16 %v518
        %v1184 = vunpack.c.l.b16 %v519
        %v1185 = vunpack.c.h.b16 %v519
        %v1186 = vunpack.c.l.b16 %v520
        %v1187 = vunpack.c.h.b16 %v520
        %v1188 = vunpack.c.l.b16 %v521
        %v1189 = vunpack.c.h.b16 %v521
        %v1190 = vunpack.c.l.b16 %v522
        %v1191 = vunpack.c.h.b16 %v522
        %v1192 = vunpack.c.l.b16 %v523
        %v1193 = vunpack.c.h.b16 %v523
        %v1194 = vunpack.c.l.b16 %v524
        %v1195 = vunpack.c.h.b16 %v524
        %v1196 = vunpack.c.l.b16 %v525
        %v1197 = vunpack.c.h.b16 %v525
        %v1198 = vunpack.c.l.b16 %v526
        %v1199 = vunpack.c.h.b16 %v526
        %v1200 = vunpack.c.l.b16 %v527
        %v1201 = vunpack.c.h.b16 %v527
        %v1202 = vunpack.c.l.b16 %v528
        %v1203 = vunpack.c.h.b16 %v528
        %v1204 = vunpack.c.l.b16 %v529
        %v1205 = vunpack.c.h.b16 %v529
        %v1206 = vunpack.c.l.b16 %v530
        %v1207 = vunpack.c.h.b16 %v530
        %v1208 = vunpack.c.l.b16 %v531
        %v1209 = vunpack.c.h.b16 %v531
        %v1210 = vunpack.c.l.b16 %v532
        %v1211 = vunpack.c.h.b16 %v532
        %v1212 = vunpack.c.l.b16 %v533
        %v1213 = vunpack.c.h.b16 %v533
        %v1214 = vunpack.c.l.b16 %v534
        %v1215 = vunpack.c.h.b16 %v534
        %v1216 = vunpack.c.l.b16 %v535
        %v1217 = vunpack.c.h.b16 %v535
        %v1218 = vunpack.c.l.b16 %v536
        %v1219 = vunpack.c.h.b16 %v536
        %v1220 = vunpack.c.l.b16 %v537
        %v1221 = vunpack.c.h.b16 %v537
        %v1222 = vunpack.c.l.b16 %v538
        %v1223 = vunpack.c.h.b16 %v538
        %v1224 = vunpack.c.l.b16 %v539
        %v1225 = vunpack.c.h.b16 %v539
        %v1226 = vunpack.c.l.b16 %v540
        %v1227 = vunpack.c.h.b16 %v540
        %v1228 = vunpack.c.l.b16 %v541
        %v1229 = vunpack.c.h.b16 %v541
        %v1230 = vunpack.c.l.b16 %v542
        %v1231 = vunpack.c.h.b16 %v542
        %v1232 = vunpack.c.l.b16 %v543
        %v1233 = vunpack.c.h.b16 %v543
        %v1234 = vunpack.c.l.b16 %v544
        %v1235 = vunpack.c.h.b16 %v544
        %v1236 = vunpack.c.l.b16 %v545
        %v1237 = vunpack.c.h.b16 %v545
        %v1238 = vunpack.c.l.b16 %v546
        %v1239 = vunpack.c.h.b16 %v546
        %v1240 = vunpack.c.l.b16 %v547
        %v1241 = vunpack.c.h.b16 %v547
        %v1242 = vunpack.c.l.b16 %v548
        %v1243 = vunpack.c.h.b16 %v548
        %v1244 = vunpack.c.l.b16 %v549
        %v1245 = vunpack.c.h.b16 %v549
        %v1246 = vunpack.c.l.b16 %v550
        %v1247 = vunpack.c.h.b16 %v550
        %v1248 = vunpack.c.l.b16 %v551
        %v1249 = vunpack.c.h.b16 %v551
        %v1250 = vunpack.c.l.b16 %v552
        %v1251 = vunpack.c.h.b16 %v552
        %v1252 = vunpack.c.l.b16 %v553
        %v1253 = vunpack.c.h.b16 %v553
        %v1254 = vunpack.c.l.b16 %v554
        %v1255 = vunpack.c.h.b16 %v554
        %v1256 = vunpack.c.l.b16 %v555
        %v1257 = vunpack.c.h.b16 %v555
        %v1258 = vunpack.c.l.b16 %v556
        %v1259 = vunpack.c.h.b16 %v556
        %v1260 = vunpack.c.l.b16 %v557
        %v1261 = vunpack.c.h.b16 %v557
        %v1262 = vunpack.c.l.b16 %v558
        %v1263 = vunpack.c.h.b16 %v558
        %v1264 = vunpack.c.l.b16 %v559
        %v1265 = vunpack.c.h.b16 %v559
        %v1266 = vunpack.c.l.b16 %v560
        %v1267 = vunpack.c.h.b16 %v560
        %v1268 = vunpack.c.l.b16 %v561
        %v1269 = vunpack.c.h.b16 %v561
        %v1270 = vunpack.c.l.b16 %v562
        %v1271 = vunpack.c.h.b16 %v562
        %v1272 = vunpack.c.l.b16 %v563
        %v1273 = vunpack.c.h.b16 %v563
        %v1274 = vunpack.c.l.b16 %v564
        %v1275 = vunpack.c.h.b16 %v564
        %v1276 = vunpack.c.l.b16 %v565
        %v1277 = vunpack.c.h.b16 %v565
        %v1278 = vunpack.c.l.b16 %v566
        %v1279 = vunpack.c.h.b16 %v566
        %v1280 = vunpack.c.l.b16 %v567
        %v1281 = vunpack.c.h.b16 %v567
        %v1282 = vunpack.c.l.b16 %v568
        %v1283 = vunpack.c.h.b16 %v568
        %v1284 = vunpack.c.l.b16 %v569
        %v1285 = vunpack.c.h.b16 %v569
        %v1286 = vunpack.c.l.b16 %v570
        %v1287 = vunpack.c.h.b16 %v570
        %v1288 = vunpack.c.l.b16 %v571
        %v1289 = vunpack.c.h.b16 %v571
        %v1290 = vunpack.c.l.b16 %v572
        %v1291 = vunpack.c.h.b16 %v572
        %v1292 = vunpack.c.l.b16 %v573
        %v1293 = vunpack.c.h.b16 %v573
        %v1294 = vunpack.c.l.b16 %v574
        %v1295 = vunpack.c.h.b16 %v574
        %v1296 = vunpack.c.l.b16 %v575
        %v1297 = vunpack.c.h.b16 %v575
        %v1298 = vunpack.c.l.b16 %v576
        %v1299 = vunpack.c.h.b16 %v576
        %v1300 = vunpack.c.l.b16 %v577
        %v1301 = vunpack.c.h.b16 %v577
        %v1302 = vunpack.c.l.b16 %v578
        %v1303 = vunpack.c.h.b16 %v578
        %v1304 = vunpack.c.l.b16 %v579
        %v1305 = vunpack.c.h.b16 %v579
        %v1306 = vunpack.c.l.b16 %v580
        %v1307 = vunpack.c.h.b16 %v580
        %v1308 = vunpack.c.l.b16 %v581
        %v1309 = vunpack.c.h.b16 %v581
        %v1310 = vunpack.c.l.b16 %v582
        %v1311 = vunpack.c.h.b16 %v582
        %v1312 = vunpack.c.l.b16 %v583
        %v1313 = vunpack.c.h.b16 %v583
        %v1314 = vunpack.c.l.b16 %v584
        %v1315 = vunpack.c.h.b16 %v584
        %v1316 = vunpack.c.l.b16 %v585
        %v1317 = vunpack.c.h.b16 %v585
        %v1318 = vunpack.c.l.b16 %v586
        %v1319 = vunpack.c.h.b16 %v586
        %v1320 = vunpack.c.l.b16 %v587
        %v1321 = vunpack.c.h.b16 %v587
        %v1322 = vunpack.c.l.b16 %v588
        %v1323 = vunpack.c.h.b16 %v588
        %v1324 = vunpack.c.l.b16 %v589
        %v1325 = vunpack.c.h.b16 %v589
        %v1326 = vunpack.c.l.b16 %v590
        %v1327 = vunpack.c.h.b16 %v590
        %v1328 = vunpack.c.l.b16 %v591
        %v1329 = vunpack.c.h.b16 %v591
        %v1330 = vunpack.c.l.b16 %v592
        %v1331 = vunpack.c.h.b16 %v592
        %v1332 = vunpack.c.l.b16 %v593
        %v1333 = vunpack.c.h.b16 %v593
        %v1334 = vunpack.c.l.b16 %v594
        %v1335 = vunpack.c.h.b16 %v594
        %v1336 = vunpack.c.l.b16 %v595
        %v1337 = vunpack.c.h.b16 %v595
        %v1338 = vunpack.c.l.b16 %v596
        %v1339 = vunpack.c.h.b16 %v596
        %v1340 = vunpack.c.l.b16 %v597
        %v1341 = vunpack.c.h.b16 %v597
        %v1342 = vunpack.c.l.b16 %v598
        %v1343 = vunpack.c.h.b16 %v598
        %v1344 = vunpack.c.l.b16 %v599
        %v1345 = vunpack.c.h.b16 %v599
        %v1346 = vunpack.c.l.b16 %v600
        %v1347 = vunpack.c.h.b16 %v600
        %v1348 = vunpack.c.l.b16 %v601
        %v1349 = vunpack.c.h.b16 %v601
        %v1350 = vunpack.c.l.b16 %v602
        %v1351 = vunpack.c.h.b16 %v602
        %v1352 = vunpack.c.l.b16 %v603
        %v1353 = vunpack.c.h.b16 %v603
        %v1354 = vunpack.c.l.b16 %v604
        %v1355 = vunpack.c.h.b16 %v604
        %v1356 = vunpack.c.l.b16 %v605
        %v1357 = vunpack.c.h.b16 %v605
        %v1358 = vunpack.c.l.b16 %v606
        %v1359 = vunpack.c.h.b16 %v606
        %v1360 = vunpack.c.l.b16 %v607
        %v1361 = vunpack.c.h.b16 %v607
        %v1362 = vunpack.c.l.b16 %v608
        %v1363 = vunpack.c.h.b16 %v608
        %v1364 = vunpack.c.l.b16 %v609
        %v1365 = vunpack.c.h.b16 %v609
        %v1366 = vunpack.c.l.b16 %v610
        %v1367 = vunpack.c.h.b16 %v610
        %v1368 = vunpack.c.l.b16 %v611
        %v1369 = vunpack.c.h.b16 %v611
        %v1370 = vunpack.c.l.b16 %v612
        %v1371 = vunpack.c.h.b16 %v612
        %v1372 = vunpack.c.l.b16 %v613
        %v1373 = vunpack.c.h.b16 %v613
        %v1374 = vunpack.c.l.b16 %v614
        %v1375 = vunpack.c.h.b16 %v614
        %v1376 = vunpack.c.l.b16 %v615
        %v1377 = vunpack.c.h.b16 %v615
        %v1378 = vunpack.c.l.b16 %v616
        %v1379 = vunpack.c.h.b16 %v616
        %v1380 = vunpack.c.l.b16 %v617
        %v1381 = vunpack.c.h.b16 %v617
        %v1382 = vunpack.c.l.b16 %v618
        %v1383 = vunpack.c.h.b16 %v618
        %v1384 = vunpack.c.l.b16 %v619
        %v1385 = vunpack.c.h.b16 %v619
        %v1386 = vunpack.c.l.b16 %v620
        %v1387 = vunpack.c.h.b16 %v620
        %v1388 = vunpack.c.l.b16 %v621
        %v1389 = vunpack.c.h.b16 %v621
        %v1390 = vunpack.c.l.b16 %v622
        %v1391 = vunpack.c.h.b16 %v622
        %v1392 = vunpack.c.l.b16 %v623
        %v1393 = vunpack.c.h.b16 %v623
        %v1394 = vunpack.c.l.b16 %v624
        %v1395 = vunpack.c.h.b16 %v624
        %v1396 = vunpack.c.l.b16 %v625
        %v1397 = vunpack.c.h.b16 %v625
        %v1398 = vunpack.c.l.b16 %v626
        %v1399 = vunpack.c.h.b16 %v626
        %v1400 = vunpack.c.l.b16 %v627
        %v1401 = vunpack.c.h.b16 %v627
        %v1402 = vunpack.c.l.b16 %v628
        %v1403 = vunpack.c.h.b16 %v628
        %v1404 = vunpack.c.l.b16 %v629
        %v1405 = vunpack.c.h.b16 %v629
        %v1406 = vunpack.c.l.b16 %v630
        %v1407 = vunpack.c.h.b16 %v630
        %v1408 = vunpack.c.l.b16 %v631
        %v1409 = vunpack.c.h.b16 %v631
        %v1410 = vunpack.c.l.b16 %v632
        %v1411 = vunpack.c.h.b16 %v632
        %v1412 = vunpack.c.l.b16 %v633
        %v1413 = vunpack.c.h.b16 %v633
        %v1414 = vunpack.c.l.b16 %v634
        %v1415 = vunpack.c.h.b16 %v634
        %v1416 = vunpack.c.l.b16 %v635
        %v1417 = vunpack.c.h.b16 %v635
        %v1418 = vunpack.c.l.b16 %v636
        %v1419 = vunpack.c.h.b16 %v636
        %v1420 = vunpack.c.l.b16 %v637
        %v1421 = vunpack.c.h.b16 %v637
        %v1422 = vunpack.c.l.b16 %v638
        %v1423 = vunpack.c.h.b16 %v638
        %v1424 = vunpack.c.l.b16 %v639
        %v1425 = vunpack.c.h.b16 %v639
        %v1426 = vunpack.c.l.b16 %v640
        %v1427 = vunpack.c.h.b16 %v640
        %v1428 = vunpack.c.l.b16 %v641
        %v1429 = vunpack.c.h.b16 %v641
        %v1430 = vunpack.c.l.b16 %v642
        %v1431 = vunpack.c.h.b16 %v642
        %v1432 = vunpack.c.l.b16 %v643
        %v1433 = vunpack.c.h.b16 %v643
        %v1434 = vunpack.c.l.b16 %v644
        %v1435 = vunpack.c.h.b16 %v644
        %v1436 = vunpack.c.l.b16 %v645
        %v1437 = vunpack.c.h.b16 %v645
        %v1438 = vunpack.c.l.b16 %v646
        %v1439 = vunpack.c.h.b16 %v646
        %v1440 = vunpack.c.l.b16 %v647
        %v1441 = vunpack.c.h.b16 %v647
        %v1442 = vunpack.c.l.b16 %v648
        %v1443 = vunpack.c.h.b16 %v648
        %v1444 = vunpack.c.l.b16 %v649
        %v1445 = vunpack.c.h.b16 %v649
        %v1446 = vunpack.c.l.b16 %v650
        %v1447 = vunpack.c.h.b16 %v650
        %v1448 = vunpack.c.l.b16 %v651
        %v1449 = vunpack.c.h.b16 %v651
        %v1450 = vunpack.c.l.b16 %v652
        %v1451 = vunpack.c.h.b16 %v652
        %v1452 = vunpack.c.l.b16 %v653
        %v1453 = vunpack.c.h.b16 %v653
        %v1454 = vunpack.c.l.b16 %v654
        %v1455 = vunpack.c.h.b16 %v654
        %v1456 = vunpack.c.l.b16 %v655
        %v1457 = vunpack.c.h.b16 %v655
        %v1458 = vunpack.c.l.b16 %v656
        %v1459 = vunpack.c.h.b16 %v656
        %v1460 = vunpack.c.l.b16 %v657
        %v1461 = vunpack.c.h.b16 %v657
        %v1462 = vunpack.c.l.b16 %v658
        %v1463 = vunpack.c.h.b16 %v658
        %v1464 = vunpack.c.l.b16 %v659
        %v1465 = vunpack.c.h.b16 %v659
        %v1466 = vunpack.c.l.b16 %v660
        %v1467 = vunpack.c.h.b16 %v660
        %v1468 = vunpack.c.l.b16 %v661
        %v1469 = vunpack.c.h.b16 %v661
        %v1470 = vunpack.c.l.b16 %v662
        %v1471 = vunpack.c.h.b16 %v662
        %v1472 = vunpack.c.l.b16 %v663
        %v1473 = vunpack.c.h.b16 %v663
        %v1474 = vunpack.c.l.b16 %v664
        %v1475 = vunpack.c.h.b16 %v664
        %v1476 = vunpack.c.l.b16 %v665
        %v1477 = vunpack.c.h.b16 %v665
        %v1478 = vunpack.c.l.b16 %v666
        %v1479 = vunpack.c.h.b16 %v666
        %v1480 = vunpack.c.l.b16 %v667
        %v1481 = vunpack.c.h.b16 %v667
        %v1482 = vunpack.c.l.b16 %v668
        %v1483 = vunpack.c.h.b16 %v668
        %v1484 = vunpack.c.l.b16 %v669
        %v1485 = vunpack.c.h.b16 %v669
        %v1486 = vunpack.c.l.b16 %v670
        %v1487 = vunpack.c.h.b16 %v670
        %v1488 = vunpack.c.l.b16 %v671
        %v1489 = vunpack.c.h.b16 %v671
        %v1490 = vunpack.c.l.b16 %v672
        %v1491 = vunpack.c.h.b16 %v672
        %v1492 = vunpack.c.l.b16 %v673
        %v1493 = vunpack.c.h.b16 %v673
        %v1494 = vunpack.c.l.b16 %v674
        %v1495 = vunpack.c.h.b16 %v674
        %v1496 = vunpack.c.l.b16 %v675
        %v1497 = vunpack.c.h.b16 %v675
        %v1498 = vunpack.c.l.b16 %v676
        %v1499 = vunpack.c.h.b16 %v676
        %v1500 = vunpack.c.l.b16 %v677
        %v1501 = vunpack.c.h.b16 %v677
        %v1502 = vunpack.c.l.b16 %v678
        %v1503 = vunpack.c.h.b16 %v678
        %v1504 = vunpack.c.l.b16 %v679
        %v1505 = vunpack.c.h.b16 %v679
        %v1506 = vunpack.c.l.b16 %v680
        %v1507 = vunpack.c.h.b16 %v680
        %v1508 = vunpack.c.l.b16 %v681
        %v1509 = vunpack.c.h.b16 %v681
        %v1510 = vunpack.c.l.b16 %v682
        %v1511 = vunpack.c.h.b16 %v682
        %v1512 = vunpack.c.l.b16 %v683
        %v1513 = vunpack.c.h.b16 %v683
        %v1514 = vunpack.c.l.b16 %v684
        %v1515 = vunpack.c.h.b16 %v684
        %v1516 = vunpack.c.l.b16 %v685
        %v1517 = vunpack.c.h.b16 %v685
        %v1518 = vunpack.c.l.b16 %v686
        %v1519 = vunpack.c.h.b16 %v686
        %v1520 = vunpack.c.l.b16 %v687
        %v1521 = vunpack.c.h.b16 %v687
        %v1522 = vunpack.c.l.b16 %v688
        %v1523 = vunpack.c.h.b16 %v688
        %v1524 = vunpack.c.l.b16 %v689
        %v1525 = vunpack.c.h.b16 %v689
        %v1526 = vunpack.c.l.b16 %v690
        %v1527 = vunpack.c.h.b16 %v690
        %v1528 = vunpack.c.l.b16 %v691
        %v1529 = vunpack.c.h.b16 %v691
        %v1530 = vunpack.c.l.b16 %v692
        %v1531 = vunpack.c.h.b16 %v692
        %v1532 = vunpack.c.l.b16 %v693
        %v1533 = vunpack.c.h.b16 %v693
        %v1534 = vunpack.c.l.b16 %v694
        %v1535 = vunpack.c.h.b16 %v694
        %v1536 = vunpack.c.l.b16 %v695
        %v1537 = vunpack.c.h.b16 %v695
        %v1538 = vunpack.c.l.b16 %v696
        %v1539 = vunpack.c.h.b16 %v696
        %v1540 = vunpack.c.l.b16 %v697
        %v1541 = vunpack.c.h.b16 %v697
        %v1542 = vunpack.c.l.b16 %v698
        %v1543 = vunpack.c.h.b16 %v698
        %v1544 = vunpack.c.l.b16 %v699
        %v1545 = vunpack.c.h.b16 %v699
        %v1546 = vunpack.c.l.b16 %v700
        %v1547 = vunpack.c.h.b16 %v700
        %v1548 = vunpack.c.l.b16 %v701
        %v1549 = vunpack.c.h.b16 %v701
        %v1550 = vunpack.c.l.b16 %v702
        %v1551 = vunpack.c.h.b16 %v702
        %v1552 = vunpack.c.l.b16 %v703
        %v1553 = vunpack.c.h.b16 %v703
        %v1554 = vunpack.c.l.b16 %v704
        %v1555 = vunpack.c.h.b16 %v704
        %v1556 = vunpack.c.l.b16 %v705
        %v1557 = vunpack.c.h.b16 %v705
        %v1558 = vunpack.c.l.b16 %v706
        %v1559 = vunpack.c.h.b16 %v706
        %v1560 = vunpack.c.l.b16 %v707
        %v1561 = vunpack.c.h.b16 %v707
        %v1562 = vunpack.c.l.b16 %v708
        %v1563 = vunpack.c.h.b16 %v708
        %v1564 = vunpack.c.l.b16 %v709
        %v1565 = vunpack.c.h.b16 %v709
        %v1566 = vunpack.c.l.b16 %v710
        %v1567 = vunpack.c.h.b16 %v710
        %v1568 = vunpack.c.l.b16 %v711
        %v1569 = vunpack.c.h.b16 %v711
        %v1570 = vunpack.c.l.b16 %v712
        %v1571 = vunpack.c.h.b16 %v712
        %v1572 = vunpack.c.l.b16 %v713
        %v1573 = vunpack.c.h.b16 %v713
        %v1574 = vunpack.c.l.b16 %v714
        %v1575 = vunpack.c.h.b16 %v714
        %v1576 = vunpack.c.l.b16 %v715
        %v1577 = vunpack.c.h.b16 %v715
        %v1578 = vunpack.c.l.b16 %v716
        %v1579 = vunpack.c.h.b16 %v716
        %v1580 = vunpack.c.l.b16 %v717
        %v1581 = vunpack.c.h.b16 %v717
        %v1582 = vunpack.c.l.b16 %v718
        %v1583 = vunpack.c.h.b16 %v718
        %v1584 = vunpack.c.l.b16 %v719
        %v1585 = vunpack.c.h.b16 %v719
        %v1586 = vunpack.c.l.b16 %v720
        %v1587 = vunpack.c.h.b16 %v720
        %v1588 = vunpack.c.l.b16 %v721
        %v1589 = vunpack.c.h.b16 %v721
        %v1590 = vunpack.c.l.b16 %v722
        %v1591 = vunpack.c.h.b16 %v722
        %v1592 = vunpack.c.l.b16 %v723
        %v1593 = vunpack.c.h.b16 %v723
        %v1594 = vpack.c.b16 %v1086, %v1082
        %v1595 = vpack.c.b16 %v1087, %v1083
        %v1596 = vpack.c.b16 %v1088, %v1084
        %v1597 = vpack.c.b16 %v1089, %v1085
        %v1598 = vpack.c.b16 %v1094, %v1090
        %v1599 = vpack.c.b16 %v1095, %v1091
        %v1600 = vpack.c.b16 %v1096, %v1092
        %v1601 = vpack.c.b16 %v1097, %v1093
        %v1602 = vpack.c.b16 %v1102, %v1098
        %v1603 = vpack.c.b16 %v1103, %v1099
        %v1604 = vpack.c.b16 %v1104, %v1100
        %v1605 = vpack.c.b16 %v1105, %v1101
        %v1606 = vpack.c.b16 %v1110, %v1106
        %v1607 = vpack.c.b16 %v1111, %v1107
        %v1608 = vpack.c.b16 %v1112, %v1108
        %v1609 = vpack.c.b16 %v1113, %v1109
        %v1610 = vpack.c.b16 %v1118, %v1114
        %v1611 = vpack.c.b16 %v1119, %v1115
        %v1612 = vpack.c.b16 %v1120, %v1116
        %v1613 = vpack.c.b16 %v1121, %v1117
        %v1614 = vpack.c.b16 %v1126, %v1122
        %v1615 = vpack.c.b16 %v1127, %v1123
        %v1616 = vpack.c.b16 %v1128, %v1124
        %v1617 = vpack.c.b16 %v1129, %v1125
        %v1618 = vpack.c.b16 %v1134, %v1130
        %v1619 = vpack.c.b16 %v1135, %v1131
        %v1620 = vpack.c.b16 %v1136, %v1132
        %v1621 = vpack.c.b16 %v1137, %v1133
        %v1622 = vpack.c.b16 %v1142, %v1138
        %v1623 = vpack.c.b16 %v1143, %v1139
        %v1624 = vpack.c.b16 %v1144, %v1140
        %v1625 = vpack.c.b16 %v1145, %v1141
        %v1626 = vpack.c.b16 %v1150, %v1146
        %v1627 = vpack.c.b16 %v1151, %v1147
        %v1628 = vpack.c.b16 %v1152, %v1148
        %v1629 = vpack.c.b16 %v1153, %v1149
        %v1630 = vpack.c.b16 %v1158, %v1154
        %v1631 = vpack.c.b16 %v1159, %v1155
        %v1632 = vpack.c.b16 %v1160, %v1156
        %v1633 = vpack.c.b16 %v1161, %v1157
        %v1634 = vpack.c.b16 %v1166, %v1162
        %v1635 = vpack.c.b16 %v1167, %v1163
        %v1636 = vpack.c.b16 %v1168, %v1164
        %v1637 = vpack.c.b16 %v1169, %v1165
        %v1638 = vpack.c.b16 %v1174, %v1170
        %v1639 = vpack.c.b16 %v1175, %v1171
        %v1640 = vpack.c.b16 %v1176, %v1172
        %v1641 = vpack.c.b16 %v1177, %v1173
        %v1642 = vpack.c.b16 %v1182, %v1178
        %v1643 = vpack.c.b16 %v1183, %v1179
        %v1644 = vpack.c.b16 %v1184, %v1180
        %v1645 = vpack.c.b16 %v1185, %v1181
        %v1646 = vpack.c.b16 %v1190, %v1186
        %v1647 = vpack.c.b16 %v1191, %v1187
        %v1648 = vpack.c.b16 %v1192, %v1188
        %v1649 = vpack.c.b16 %v1193, %v1189
        %v1650 = vpack.c.b16 %v1198, %v1194
        %v1651 = vpack.c.b16 %v1199, %v1195
        %v1652 = vpack.c.b16 %v1200, %v1196
        %v1653 = vpack.c.b16 %v1201, %v1197
        %v1654 = vpack.c.b16 %v1206, %v1202
        %v1655 = vpack.c.b16 %v1207, %v1203
        %v1656 = vpack.c.b16 %v1208, %v1204
        %v1657 = vpack.c.b16 %v1209, %v1205
        %v1658 = vpack.c.b16 %v1214, %v1210
        %v1659 = vpack.c.b16 %v1215, %v1211
        %v1660 = vpack.c.b16 %v1216, %v1212
        %v1661 = vpack.c.b16 %v1217, %v1213
        %v1662 = vpack.c.b16 %v1222, %v1218
        %v1663 = vpack.c.b16 %v1223, %v1219
        %v1664 = vpack.c.b16 %v1224, %v1220
        %v1665 = vpack.c.b16 %v1225, %v1221
        %v1666 = vpack.c.b16 %v1230, %v1226
        %v1667 = vpack.c.b16 %v1231, %v1227
        %v1668 = vpack.c.b16 %v1232, %v1228
        %v1669 = vpack.c.b16 %v1233, %v1229
        %v1670 = vpack.c.b16 %v1238, %v1234
        %v1671 = vpack.c.b16 %v1239, %v1235
        %v1672 = vpack.c.b16 %v1240, %v1236
        %v1673 = vpack.c.b16 %v1241, %v1237
        %v1674 = vpack.c.b16 %v1246, %v1242
        %v1675 = vpack.c.b16 %v1247, %v1243
        %v1676 = vpack.c.b16 %v1248, %v1244
        %v1677 = vpack.c.b16 %v1249, %v1245
        %v1678 = vpack.c.b16 %v1254, %v1250
        %v1679 = vpack.c.b16 %v1255, %v1251
        %v1680 = vpack.c.b16 %v1256, %v1252
        %v1681 = vpack.c.b16 %v1257, %v1253
        %v1682 = vpack.c.b16 %v1262, %v1258
        %v1683 = vpack.c.b16 %v1263, %v1259
        %v1684 = vpack.c.b16 %v1264, %v1260
        %v1685 = vpack.c.b16 %v1265, %v1261
        %v1686 = vpack.c.b16 %v1270, %v1266
        %v1687 = vpack.c.b16 %v1271, %v1267
        %v1688 = vpack.c.b16 %v1272, %v1268
        %v1689 = vpack.c.b16 %v1273, %v1269
        %v1690 = vpack.c.b16 %v1278, %v1274
        %v1691 = vpack.c.b16 %v1279, %v1275
        %v1692 = vpack.c.b16 %v1280, %v1276
        %v1693 = vpack.c.b16 %v1281, %v1277
        %v1694 = vpack.c.b16 %v1286, %v1282
        %v1695 = vpack.c.b16 %v1287, %v1283
        %v1696 = vpack.c.b16 %v1288, %v1284
        %v1697 = vpack.c.b16 %v1289, %v1285
        %v1698 = vpack.c.b16 %v1294, %v1290
        %v1699 = vpack.c.b16 %v1295, %v1291
        %v1700 = vpack.c.b16 %v1296, %v1292
        %v1701 = vpack.c.b16 %v1297, %v1293
        %v1702 = vpack.c.b16 %v1302, %v1298
        %v1703 = vpack.c.b16 %v1303, %v1299
        %v1704 = vpack.c.b16 %v1304, %v1300
        %v1705 = vpack.c.b16 %v1305, %v1301
        %v1706 = vpack.c.b16 %v1310, %v1306
        %v1707 = vpack.c.b16 %v1311, %v1307
        %v1708 = vpack.c.b16 %v1312, %v1308
        %v1709 = vpack.c.b16 %v1313, %v1309
        %v1710 = vpack.c.b16 %v1318, %v1314
        %v1711 = vpack.c.b16 %v1319, %v1315
        %v1712 = vpack.c.b16 %v1320, %v1316
        %v1713 = vpack.c.b16 %v1321, %v1317
        %v1714 = vpack.c.b16 %v1326, %v1322
        %v1715 = vpack.c.b16 %v1327, %v1323
        %v1716 = vpack.c.b16 %v1328, %v1324
        %v1717 = vpack.c.b16 %v1329, %v1325
        %v1718 = vpack.c.b16 %v1334, %v1330
        %v1719 = vpack.c.b16 %v1335, %v1331
        %v1720 = vpack.c.b16 %v1336, %v1332
        %v1721 = vpack.c.b16 %v1337, %v1333
        %v1722 = vpack.c.b16 %v1342, %v1338
        %v1723 = vpack.c.b16 %v1343, %v1339
        %v1724 = vpack.c.b16 %v1344, %v1340
        %v1725 = vpack.c.b16 %v1345, %v1341
        %v1726 = vpack.c.b16 %v1350, %v1346
        %v1727 = vpack.c.b16 %v1351, %v1347
        %v1728 = vpack.c.b16 %v1352, %v1348
        %v1729 = vpack.c.b16 %v1353, %v1349
        %v1730 = vpack.c.b16 %v1358, %v1354
        %v1731 = vpack.c.b16 %v1359, %v1355
        %v1732 = vpack.c.b16 %v1360, %v1356
        %v1733 = vpack.c.b16 %v1361, %v1357
        %v1734 = vpack.c.b16 %v1366, %v1362
        %v1735 = vpack.c.b16 %v1367, %v1363
        %v1736 = vpack.c.b16 %v1368, %v1364
        %v1737 = vpack.c.b16 %v1369, %v1365
        %v1738 = vpack.c.b16 %v1374, %v1370
        %v1739 = vpack.c.b16 %v1375, %v1371
        %v1740 = vpack.c.b16 %v1376, %v1372
        %v1741 = vpack.c.b16 %v1377, %v1373
        %v1742 = vpack.c.b16 %v1382, %v1378
        %v1743 = vpack.c.b16 %v1383, %v1379
        %v1744 = vpack.c.b16 %v1384, %v1380
        %v1745 = vpack.c.b16 %v1385, %v1381
        %v1746 = vpack.c.b16 %v1390, %v1386
        %v1747 = vpack.c.b16 %v1391, %v1387
        %v1748 = vpack.c.b16 %v1392, %v1388
        %v1749 = vpack.c.b16 %v1393, %v1389
        %v1750 = vpack.c.b16 %v1398, %v1394
        %v1751 = vpack.c.b16 %v1399, %v1395
        %v1752 = vpack.c.b16 %v1400, %v1396
        %v1753 = vpack.c.b16 %v1401, %v1397
        %v1754 = vpack.c.b16 %v1406, %v1402
        %v1755 = vpack.c.b16 %v1407, %v1403
        %v1756 = vpack.c.b16 %v1408, %v1404
        %v1757 = vpack.c.b16 %v1409, %v1405
        %v1758 = vpack.c.b16 %v1414, %v1410
        %v1759 = vpack.c.b16 %v1415, %v1411
        %v1760 = vpack.c.b16 %v1416, %v1412
        %v1761 = vpack.c.b16 %v1417, %v1413
        %v1762 = vpack.c.b16 %v1422, %v1418
        %v1763 = vpack.c.b16 %v1423, %v1419
        %v1764 = vpack.c.b16 %v1424, %v1420
        %v1765 = vpack.c.b16 %v1425, %v1421
        %v1766 = vpack.c.b16 %v1430, %v1426
        %v1767 = vpack.c.b16 %v1431, %v1427
        %v1768 = vpack.c.b16 %v1432, %v1428
        %v1769 = vpack.c.b16 %v1433, %v1429
        %v1770 = vpack.c.b16 %v1438, %v1434
        %v1771 = vpack.c.b16 %v1439, %v1435
        %v1772 = vpack.c.b16 %v1440, %v1436
        %v1773 = vpack.c.b16 %v1441, %v1437
        %v1774 = vpack.c.b16 %v1446, %v1442
        %v1775 = vpack.c.b16 %v1447, %v1443
        %v1776 = vpack.c.b16 %v1448, %v1444
        %v1777 = vpack.c.b16 %v1449, %v1445
        %v1778 = vpack.c.b16 %v1454, %v1450
        %v1779 = vpack.c.b16 %v1455, %v1451
        %v1780 = vpack.c.b16 %v1456, %v1452
        %v1781 = vpack.c.b16 %v1457, %v1453
        %v1782 = vpack.c.b16 %v1462, %v1458
        %v1783 = vpack.c.b16 %v1463, %v1459
        %v1784 = vpack.c.b16 %v1464, %v1460
        %v1785 = vpack.c.b16 %v1465, %v1461
        %v1786 = vpack.c.b16 %v1470, %v1466
        %v1787 = vpack.c.b16 %v1471, %v1467
        %v1788 = vpack.c.b16 %v1472, %v1468
        %v1789 = vpack.c.b16 %v1473, %v1469
        %v1790 = vpack.c.b16 %v1478, %v1474
        %v1791 = vpack.c.b16 %v1479, %v1475
        %v1792 = vpack.c.b16 %v1480, %v1476
        %v1793 = vpack.c.b16 %v1481, %v1477
        %v1794 = vpack.c.b16 %v1486, %v1482
        %v1795 = vpack.c.b16 %v1487, %v1483
        %v1796 = vpack.c.b16 %v1488, %v1484
        %v1797 = vpack.c.b16 %v1489, %v1485
        %v1798 = vpack.c.b16 %v1494, %v1490
        %v1799 = vpack.c.b16 %v1495, %v1491
        %v1800 = vpack.c.b16 %v1496, %v1492
        %v1801 = vpack.c.b16 %v1497, %v1493
        %v1802 = vpack.c.b16 %v1502, %v1498
        %v1803 = vpack.c.b16 %v1503, %v1499
        %v1804 = vpack.c.b16 %v1504, %v1500
        %v1805 = vpack.c.b16 %v1505, %v1501
        %v1806 = vpack.c.b16 %v1510, %v1506
        %v1807 = vpack.c.b16 %v1511, %v1507
        %v1808 = vpack.c.b16 %v1512, %v1508
        %v1809 = vpack.c.b16 %v1513, %v1509
        %v1810 = vpack.c.b16 %v1518, %v1514
        %v1811 = vpack.c.b16 %v1519, %v1515
        %v1812 = vpack.c.b16 %v1520, %v1516
        %v1813 = vpack.c.b16 %v1521, %v1517
        %v1814 = vpack.c.b16 %v1526, %v1522
        %v1815 = vpack.c.b16 %v1527, %v1523
        %v1816 = vpack.c.b16 %v1528, %v1524
        %v1817 = vpack.c.b16 %v1529, %v1525
        %v1818 = vpack.c.b16 %v1534, %v1530
        %v1819 = vpack.c.b16 %v1535, %v1531
        %v1820 = vpack.c.b16 %v1536, %v1532
        %v1821 = vpack.c.b16 %v1537, %v1533
        %v1822 = vpack.c.b16 %v1542, %v1538
        %v1823 = vpack.c.b16 %v1543, %v1539
        %v1824 = vpack.c.b16 %v1544, %v1540
        %v1825 = vpack.c.b16 %v1545, %v1541
        %v1826 = vpack.c.b16 %v1550, %v1546
        %v1827 = vpack.c.b16 %v1551, %v1547
        %v1828 = vpack.c.b16 %v1552, %v1548
        %v1829 = vpack.c.b16 %v1553, %v1549
        %v1830 = vpack.c.b16 %v1558, %v1554
        %v1831 = vpack.c.b16 %v1559, %v1555
        %v1832 = vpack.c.b16 %v1560, %v1556
        %v1833 = vpack.c.b16 %v1561, %v1557
        %v1834 = vpack.c.b16 %v1566, %v1562
        %v1835 = vpack.c.b16 %v1567, %v1563
        %v1836 = vpack.c.b16 %v1568, %v1564
        %v1837 = vpack.c.b16 %v1569, %v1565
        %v1838 = vpack.c.b16 %v1574, %v1570
        %v1839 = vpack.c.b16 %v1575, %v1571
        %v1840 = vpack.c.b16 %v1576, %v1572
        %v1841 = vpack.c.b16 %v1577, %v1573
        %v1842 = vpack.c.b16 %v1582, %v1578
        %v1843 = vpack.c.b16 %v1583, %v1579
        %v1844 = vpack.c.b16 %v1584, %v1580
        %v1845 = vpack.c.b16 %v1585, %v1581
        %v1846 = vpack.c.b16 %v1590, %v1586
        %v1847 = vpack.c.b16 %v1591, %v1587
        %v1848 = vpack.c.b16 %v1592, %v1588
        %v1849 = vpack.c.b16 %v1593, %v1589
        %2106 = vmatprep.subr.bf16.mxu0 %v1595
        %2107 = vmatpush1.bf16.msra.mxu0 %v1594
        %2108 = vmatprep.subr.bf16.mxu0 %v1599
        %2109 = vmatpush1.bf16.msra.mxu0 %v1598
        %2110 = vmatprep.subr.bf16.mxu0 %v1603
        %2111 = vmatpush1.bf16.msra.mxu0 %v1602
        %2112 = vmatprep.subr.bf16.mxu0 %v1607
        %2113 = vmatpush1.bf16.msra.mxu0 %v1606
        %2114 = vmatprep.subr.bf16.mxu0 %v1611
        %2115 = vmatpush1.bf16.msra.mxu0 %v1610
        %2116 = vmatprep.subr.bf16.mxu0 %v1615
        %2117 = vmatpush1.bf16.msra.mxu0 %v1614
        %2118 = vmatprep.subr.bf16.mxu0 %v1619
        %2119 = vmatpush1.bf16.msra.mxu0 %v1618
        %2120 = vmatprep.subr.bf16.mxu0 %v1623
        %2121 = vmatpush1.bf16.msra.mxu0 %v1622
        %2122 = vmatprep.subr.bf16.mxu0 %v1627
        %2123 = vmatpush1.bf16.msra.mxu0 %v1626
        %2124 = vmatprep.subr.bf16.mxu0 %v1631
        %2125 = vmatpush1.bf16.msra.mxu0 %v1630
        %2126 = vmatprep.subr.bf16.mxu0 %v1635
        %2127 = vmatpush1.bf16.msra.mxu0 %v1634
        %2128 = vmatprep.subr.bf16.mxu0 %v1639
        %2129 = vmatpush1.bf16.msra.mxu0 %v1638
        %2130 = vmatprep.subr.bf16.mxu0 %v1643
        %2131 = vmatpush1.bf16.msra.mxu0 %v1642
        %2132 = vmatprep.subr.bf16.mxu0 %v1647
        %2133 = vmatpush1.bf16.msra.mxu0 %v1646
        %2134 = vmatprep.subr.bf16.mxu0 %v1651
        %2135 = vmatpush1.bf16.msra.mxu0 %v1650
        %2136 = vmatprep.subr.bf16.mxu0 %v1655
        %2137 = vmatpush1.bf16.msra.mxu0 %v1654
        %2138 = vmatprep.mubr.bf16.mxu0 %v795
        %2139 = vmatmul.mubr.bf16.gmra.mrb[0].mxu0 %v794
        %v2140 = vpop.f32.mrb[0].mxu0
        %v2141 = vadd.f32 %v729, %v2140
        %v2142 = vpop.f32.mrb[0].mxu0
        %v2143 = vadd.f32 %v733, %v2142
        %v2144 = vpop.f32.mrb[0].mxu0
        %v2145 = vadd.f32 %v729, %v2144
        %v2146 = vpop.f32.mrb[0].mxu0
        %v2147 = vadd.f32 %v733, %v2146
        %2148 = vmatprep.mubr.bf16.mxu0 %v803
        %2149 = vmatmul.mubr.bf16.gmra.mrb[0].mxu0 %v802
        %v2150 = vpop.f32.mrb[0].mxu0
        %v2151 = vadd.f32 %v729, %v2150
        %v2152 = vpop.f32.mrb[0].mxu0
        %v2153 = vadd.f32 %v733, %v2152
        %v2154 = vpop.f32.mrb[0].mxu0
        %v2155 = vadd.f32 %v729, %v2154
        %v2156 = vpop.f32.mrb[0].mxu0
        %v2157 = vadd.f32 %v733, %v2156
        %2158 = vdwg.mxu0
        %2159 = vmatprep.subr.bf16.mxu0 %v1659
        %2160 = vmatpush1.bf16.msra.mxu0 %v1658
        %2161 = vmatprep.subr.bf16.mxu0 %v1663
        %2162 = vmatpush1.bf16.msra.mxu0 %v1662
        %2163 = vmatprep.subr.bf16.mxu0 %v1667
        %2164 = vmatpush1.bf16.msra.mxu0 %v1666
        %2165 = vmatprep.subr.bf16.mxu0 %v1671
        %2166 = vmatpush1.bf16.msra.mxu0 %v1670
        %2167 = vmatprep.subr.bf16.mxu0 %v1675
        %2168 = vmatpush1.bf16.msra.mxu0 %v1674
        %2169 = vmatprep.subr.bf16.mxu0 %v1679
        %2170 = vmatpush1.bf16.msra.mxu0 %v1678
        %2171 = vmatprep.subr.bf16.mxu0 %v1683
        %2172 = vmatpush1.bf16.msra.mxu0 %v1682
        %2173 = vmatprep.subr.bf16.mxu0 %v1687
        %2174 = vmatpush1.bf16.msra.mxu0 %v1686
        %2175 = vmatprep.subr.bf16.mxu0 %v1691
        %2176 = vmatpush1.bf16.msra.mxu0 %v1690
        %2177 = vmatprep.subr.bf16.mxu0 %v1695
        %2178 = vmatpush1.bf16.msra.mxu0 %v1694
        %2179 = vmatprep.subr.bf16.mxu0 %v1699
        %2180 = vmatpush1.bf16.msra.mxu0 %v1698
        %2181 = vmatprep.subr.bf16.mxu0 %v1703
        %2182 = vmatpush1.bf16.msra.mxu0 %v1702
        %2183 = vmatprep.subr.bf16.mxu0 %v1707
        %2184 = vmatpush1.bf16.msra.mxu0 %v1706
        %2185 = vmatprep.subr.bf16.mxu0 %v1711
        %2186 = vmatpush1.bf16.msra.mxu0 %v1710
        %2187 = vmatprep.subr.bf16.mxu0 %v1715
        %2188 = vmatpush1.bf16.msra.mxu0 %v1714
        %2189 = vmatprep.subr.bf16.mxu0 %v1719
        %2190 = vmatpush1.bf16.msra.mxu0 %v1718
        %2191 = vmatprep.mubr.bf16.mxu0 %v797
        %2192 = vmatmul.mubr.bf16.gmra.mrb[0].mxu0 %v796
        %v2193 = vpop.f32.mrb[0].mxu0
        %v2194 = vadd.f32 %v2141, %v2193
        %v2195 = vpop.f32.mrb[0].mxu0
        %v2196 = vadd.f32 %v2143, %v2195
        %v2197 = vpop.f32.mrb[0].mxu0
        %v2198 = vadd.f32 %v2145, %v2197
        %v2199 = vpop.f32.mrb[0].mxu0
        %v2200 = vadd.f32 %v2147, %v2199
        %2201 = vmatprep.mubr.bf16.mxu0 %v805
        %2202 = vmatmul.mubr.bf16.gmra.mrb[0].mxu0 %v804
        %v2203 = vpop.f32.mrb[0].mxu0
        %v2204 = vadd.f32 %v2151, %v2203
        %v2205 = vpop.f32.mrb[0].mxu0
        %v2206 = vadd.f32 %v2153, %v2205
        %v2207 = vpop.f32.mrb[0].mxu0
        %v2208 = vadd.f32 %v2155, %v2207
        %v2209 = vpop.f32.mrb[0].mxu0
        %v2210 = vadd.f32 %v2157, %v2209
        %2211 = vdwg.mxu0
        %2212 = vmatprep.subr.bf16.mxu0 %v1723
        %2213 = vmatpush1.bf16.msra.mxu0 %v1722
        %2214 = vmatprep.subr.bf16.mxu0 %v1727
        %2215 = vmatpush1.bf16.msra.mxu0 %v1726
        %2216 = vmatprep.subr.bf16.mxu0 %v1731
        %2217 = vmatpush1.bf16.msra.mxu0 %v1730
        %2218 = vmatprep.subr.bf16.mxu0 %v1735
        %2219 = vmatpush1.bf16.msra.mxu0 %v1734
        %2220 = vmatprep.subr.bf16.mxu0 %v1739
        %2221 = vmatpush1.bf16.msra.mxu0 %v1738
        %2222 = vmatprep.subr.bf16.mxu0 %v1743
        %2223 = vmatpush1.bf16.msra.mxu0 %v1742
        %2224 = vmatprep.subr.bf16.mxu0 %v1747
        %2225 = vmatpush1.bf16.msra.mxu0 %v1746
        %2226 = vmatprep.subr.bf16.mxu0 %v1751
        %2227 = vmatpush1.bf16.msra.mxu0 %v1750
        %2228 = vmatprep.subr.bf16.mxu0 %v1755
        %2229 = vmatpush1.bf16.msra.mxu0 %v1754
        %2230 = vmatprep.subr.bf16.mxu0 %v1759
        %2231 = vmatpush1.bf16.msra.mxu0 %v1758
        %2232 = vmatprep.subr.bf16.mxu0 %v1763
        %2233 = vmatpush1.bf16.msra.mxu0 %v1762
        %2234 = vmatprep.subr.bf16.mxu0 %v1767
        %2235 = vmatpush1.bf16.msra.mxu0 %v1766
        %2236 = vmatprep.subr.bf16.mxu0 %v1771
        %2237 = vmatpush1.bf16.msra.mxu0 %v1770
        %2238 = vmatprep.subr.bf16.mxu0 %v1775
        %2239 = vmatpush1.bf16.msra.mxu0 %v1774
        %2240 = vmatprep.subr.bf16.mxu0 %v1779
        %2241 = vmatpush1.bf16.msra.mxu0 %v1778
        %2242 = vmatprep.subr.bf16.mxu0 %v1783
        %2243 = vmatpush1.bf16.msra.mxu0 %v1782
        %2244 = vmatprep.mubr.bf16.mxu0 %v799
        %2245 = vmatmul.mubr.bf16.gmra.mrb[0].mxu0 %v798
        %v2246 = vpop.f32.mrb[0].mxu0
        %v2247 = vadd.f32 %v2194, %v2246
        %v2248 = vpop.f32.mrb[0].mxu0
        %v2249 = vadd.f32 %v2196, %v2248
        %v2250 = vpop.f32.mrb[0].mxu0
        %v2251 = vadd.f32 %v2198, %v2250
        %v2252 = vpop.f32.mrb[0].mxu0
        %v2253 = vadd.f32 %v2200, %v2252
        %2254 = vmatprep.mubr.bf16.mxu0 %v807
        %2255 = vmatmul.mubr.bf16.gmra.mrb[0].mxu0 %v806
        %v2256 = vpop.f32.mrb[0].mxu0
        %v2257 = vadd.f32 %v2204, %v2256
        %v2258 = vpop.f32.mrb[0].mxu0
        %v2259 = vadd.f32 %v2206, %v2258
        %v2260 = vpop.f32.mrb[0].mxu0
        %v2261 = vadd.f32 %v2208, %v2260
        %v2262 = vpop.f32.mrb[0].mxu0
        %v2263 = vadd.f32 %v2210, %v2262
        %2264 = vdwg.mxu0
        %2265 = vmatprep.subr.bf16.mxu0 %v1787
        %2266 = vmatpush1.bf16.msra.mxu0 %v1786
        %2267 = vmatprep.subr.bf16.mxu0 %v1791
        %2268 = vmatpush1.bf16.msra.mxu0 %v1790
        %2269 = vmatprep.subr.bf16.mxu0 %v1795
        %2270 = vmatpush1.bf16.msra.mxu0 %v1794
        %2271 = vmatprep.subr.bf16.mxu0 %v1799
        %2272 = vmatpush1.bf16.msra.mxu0 %v1798
        %2273 = vmatprep.subr.bf16.mxu0 %v1803
        %2274 = vmatpush1.bf16.msra.mxu0 %v1802
        %2275 = vmatprep.subr.bf16.mxu0 %v1807
        %2276 = vmatpush1.bf16.msra.mxu0 %v1806
        %2277 = vmatprep.subr.bf16.mxu0 %v1811
        %2278 = vmatpush1.bf16.msra.mxu0 %v1810
        %2279 = vmatprep.subr.bf16.mxu0 %v1815
        %2280 = vmatpush1.bf16.msra.mxu0 %v1814
        %2281 = vmatprep.subr.bf16.mxu0 %v1819
        %2282 = vmatpush1.bf16.msra.mxu0 %v1818
        %2283 = vmatprep.subr.bf16.mxu0 %v1823
        %2284 = vmatpush1.bf16.msra.mxu0 %v1822
        %2285 = vmatprep.subr.bf16.mxu0 %v1827
        %2286 = vmatpush1.bf16.msra.mxu0 %v1826
        %2287 = vmatprep.subr.bf16.mxu0 %v1831
        %2288 = vmatpush1.bf16.msra.mxu0 %v1830
        %2289 = vmatprep.subr.bf16.mxu0 %v1835
        %2290 = vmatpush1.bf16.msra.mxu0 %v1834
        %2291 = vmatprep.subr.bf16.mxu0 %v1839
        %2292 = vmatpush1.bf16.msra.mxu0 %v1838
        %2293 = vmatprep.subr.bf16.mxu0 %v1843
        %2294 = vmatpush1.bf16.msra.mxu0 %v1842
        %2295 = vmatprep.subr.bf16.mxu0 %v1847
        %2296 = vmatpush1.bf16.msra.mxu0 %v1846
        %2297 = vmatprep.mubr.bf16.mxu0 %v801
        %2298 = vmatmul.mubr.bf16.gmra.mrb[0].mxu0 %v800
        %v2299 = vpop.f32.mrb[0].mxu0
        %v2300 = vadd.f32 %v2247, %v2299
        %v2301 = vpop.f32.mrb[0].mxu0
        %v2302 = vadd.f32 %v2249, %v2301
        %v2303 = vpop.f32.mrb[0].mxu0
        %v2304 = vadd.f32 %v2251, %v2303
        %v2305 = vpop.f32.mrb[0].mxu0
        %v2306 = vadd.f32 %v2253, %v2305
        %2307 = vmatprep.mubr.bf16.mxu0 %v809
        %2308 = vmatmul.mubr.bf16.gmra.mrb[0].mxu0 %v808
        %v2309 = vpop.f32.mrb[0].mxu0
        %v2310 = vadd.f32 %v2257, %v2309
        %v2311 = vpop.f32.mrb[0].mxu0
        %v2312 = vadd.f32 %v2259, %v2311
        %v2313 = vpop.f32.mrb[0].mxu0
        %v2314 = vadd.f32 %v2261, %v2313
        %v2315 = vpop.f32.mrb[0].mxu0
        %v2316 = vadd.f32 %v2263, %v2315
        %2317 = vdwg.mxu0
        %2318 = vmatprep.subr.bf16.mxu0 %v1597
        %2319 = vmatpush1.bf16.msra.mxu0 %v1596
        %2320 = vmatprep.subr.bf16.mxu0 %v1601
        %2321 = vmatpush1.bf16.msra.mxu0 %v1600
        %2322 = vmatprep.subr.bf16.mxu0 %v1605
        %2323 = vmatpush1.bf16.msra.mxu0 %v1604
        %2324 = vmatprep.subr.bf16.mxu0 %v1609
        %2325 = vmatpush1.bf16.msra.mxu0 %v1608
        %2326 = vmatprep.subr.bf16.mxu0 %v1613
        %2327 = vmatpush1.bf16.msra.mxu0 %v1612
        %2328 = vmatprep.subr.bf16.mxu0 %v1617
        %2329 = vmatpush1.bf16.msra.mxu0 %v1616
        %2330 = vmatprep.subr.bf16.mxu0 %v1621
        %2331 = vmatpush1.bf16.msra.mxu0 %v1620
        %2332 = vmatprep.subr.bf16.mxu0 %v1625
        %2333 = vmatpush1.bf16.msra.mxu0 %v1624
        %2334 = vmatprep.subr.bf16.mxu0 %v1629
        %2335 = vmatpush1.bf16.msra.mxu0 %v1628
        %2336 = vmatprep.subr.bf16.mxu0 %v1633
        %2337 = vmatpush1.bf16.msra.mxu0 %v1632
        %2338 = vmatprep.subr.bf16.mxu0 %v1637
        %2339 = vmatpush1.bf16.msra.mxu0 %v1636
        %2340 = vmatprep.subr.bf16.mxu0 %v1641
        %2341 = vmatpush1.bf16.msra.mxu0 %v1640
        %2342 = vmatprep.subr.bf16.mxu0 %v1645
        %2343 = vmatpush1.bf16.msra.mxu0 %v1644
        %2344 = vmatprep.subr.bf16.mxu0 %v1649
        %2345 = vmatpush1.bf16.msra.mxu0 %v1648
        %2346 = vmatprep.subr.bf16.mxu0 %v1653
        %2347 = vmatpush1.bf16.msra.mxu0 %v1652
        %2348 = vmatprep.subr.bf16.mxu0 %v1657
        %2349 = vmatpush1.bf16.msra.mxu0 %v1656
        %2350 = vmatprep.mubr.bf16.mxu0 %v795
        %2351 = vmatmul.mubr.bf16.gmra.mrb[0].mxu0 %v794
        %v2352 = vpop.f32.mrb[0].mxu0
        %v2353 = vadd.f32 %v737, %v2352
        %v2354 = vpop.f32.mrb[0].mxu0
        %v2355 = vadd.f32 %v741, %v2354
        %v2356 = vpop.f32.mrb[0].mxu0
        %v2357 = vadd.f32 %v737, %v2356
        %v2358 = vpop.f32.mrb[0].mxu0
        %v2359 = vadd.f32 %v741, %v2358
        %2360 = vmatprep.mubr.bf16.mxu0 %v803
        %2361 = vmatmul.mubr.bf16.gmra.mrb[0].mxu0 %v802
        %v2362 = vpop.f32.mrb[0].mxu0
        %v2363 = vadd.f32 %v737, %v2362
        %v2364 = vpop.f32.mrb[0].mxu0
        %v2365 = vadd.f32 %v741, %v2364
        %v2366 = vpop.f32.mrb[0].mxu0
        %v2367 = vadd.f32 %v737, %v2366
        %v2368 = vpop.f32.mrb[0].mxu0
        %v2369 = vadd.f32 %v741, %v2368
        %2370 = vdwg.mxu0
        %2371 = vmatprep.subr.bf16.mxu0 %v1661
        %2372 = vmatpush1.bf16.msra.mxu0 %v1660
        %2373 = vmatprep.subr.bf16.mxu0 %v1665
        %2374 = vmatpush1.bf16.msra.mxu0 %v1664
        %2375 = vmatprep.subr.bf16.mxu0 %v1669
        %2376 = vmatpush1.bf16.msra.mxu0 %v1668
        %2377 = vmatprep.subr.bf16.mxu0 %v1673
        %2378 = vmatpush1.bf16.msra.mxu0 %v1672
        %2379 = vmatprep.subr.bf16.mxu0 %v1677
        %2380 = vmatpush1.bf16.msra.mxu0 %v1676
        %2381 = vmatprep.subr.bf16.mxu0 %v1681
        %2382 = vmatpush1.bf16.msra.mxu0 %v1680
        %2383 = vmatprep.subr.bf16.mxu0 %v1685
        %2384 = vmatpush1.bf16.msra.mxu0 %v1684
        %2385 = vmatprep.subr.bf16.mxu0 %v1689
        %2386 = vmatpush1.bf16.msra.mxu0 %v1688
        %2387 = vmatprep.subr.bf16.mxu0 %v1693
        %2388 = vmatpush1.bf16.msra.mxu0 %v1692
        %2389 = vmatprep.subr.bf16.mxu0 %v1697
        %2390 = vmatpush1.bf16.msra.mxu0 %v1696
        %2391 = vmatprep.subr.bf16.mxu0 %v1701
        %2392 = vmatpush1.bf16.msra.mxu0 %v1700
        %2393 = vmatprep.subr.bf16.mxu0 %v1705
        %2394 = vmatpush1.bf16.msra.mxu0 %v1704
        %2395 = vmatprep.subr.bf16.mxu0 %v1709
        %2396 = vmatpush1.bf16.msra.mxu0 %v1708
        %2397 = vmatprep.subr.bf16.mxu0 %v1713
        %2398 = vmatpush1.bf16.msra.mxu0 %v1712
        %2399 = vmatprep.subr.bf16.mxu0 %v1717
        %2400 = vmatpush1.bf16.msra.mxu0 %v1716
        %2401 = vmatprep.subr.bf16.mxu0 %v1721
        %2402 = vmatpush1.bf16.msra.mxu0 %v1720
        %2403 = vmatprep.mubr.bf16.mxu0 %v797
        %2404 = vmatmul.mubr.bf16.gmra.mrb[0].mxu0 %v796
        %v2405 = vpop.f32.mrb[0].mxu0
        %v2406 = vadd.f32 %v2353, %v2405
        %v2407 = vpop.f32.mrb[0].mxu0
        %v2408 = vadd.f32 %v2355, %v2407
        %v2409 = vpop.f32.mrb[0].mxu0
        %v2410 = vadd.f32 %v2357, %v2409
        %v2411 = vpop.f32.mrb[0].mxu0
        %v2412 = vadd.f32 %v2359, %v2411
        %2413 = vmatprep.mubr.bf16.mxu0 %v805
        %2414 = vmatmul.mubr.bf16.gmra.mrb[0].mxu0 %v804
        %v2415 = vpop.f32.mrb[0].mxu0
        %v2416 = vadd.f32 %v2363, %v2415
        %v2417 = vpop.f32.mrb[0].mxu0
        %v2418 = vadd.f32 %v2365, %v2417
        %v2419 = vpop.f32.mrb[0].mxu0
        %v2420 = vadd.f32 %v2367, %v2419
        %v2421 = vpop.f32.mrb[0].mxu0
        %v2422 = vadd.f32 %v2369, %v2421
        %2423 = vdwg.mxu0
        %2424 = vmatprep.subr.bf16.mxu0 %v1725
        %2425 = vmatpush1.bf16.msra.mxu0 %v1724
        %2426 = vmatprep.subr.bf16.mxu0 %v1729
        %2427 = vmatpush1.bf16.msra.mxu0 %v1728
        %2428 = vmatprep.subr.bf16.mxu0 %v1733
        %2429 = vmatpush1.bf16.msra.mxu0 %v1732
        %2430 = vmatprep.subr.bf16.mxu0 %v1737
        %2431 = vmatpush1.bf16.msra.mxu0 %v1736
        %2432 = vmatprep.subr.bf16.mxu0 %v1741
        %2433 = vmatpush1.bf16.msra.mxu0 %v1740
        %2434 = vmatprep.subr.bf16.mxu0 %v1745
        %2435 = vmatpush1.bf16.msra.mxu0 %v1744
        %2436 = vmatprep.subr.bf16.mxu0 %v1749
        %2437 = vmatpush1.bf16.msra.mxu0 %v1748
        %2438 = vmatprep.subr.bf16.mxu0 %v1753
        %2439 = vmatpush1.bf16.msra.mxu0 %v1752
        %2440 = vmatprep.subr.bf16.mxu0 %v1757
        %2441 = vmatpush1.bf16.msra.mxu0 %v1756
        %2442 = vmatprep.subr.bf16.mxu0 %v1761
        %2443 = vmatpush1.bf16.msra.mxu0 %v1760
        %2444 = vmatprep.subr.bf16.mxu0 %v1765
        %2445 = vmatpush1.bf16.msra.mxu0 %v1764
        %2446 = vmatprep.subr.bf16.mxu0 %v1769
        %2447 = vmatpush1.bf16.msra.mxu0 %v1768
        %2448 = vmatprep.subr.bf16.mxu0 %v1773
        %2449 = vmatpush1.bf16.msra.mxu0 %v1772
        %2450 = vmatprep.subr.bf16.mxu0 %v1777
        %2451 = vmatpush1.bf16.msra.mxu0 %v1776
        %2452 = vmatprep.subr.bf16.mxu0 %v1781
        %2453 = vmatpush1.bf16.msra.mxu0 %v1780
        %2454 = vmatprep.subr.bf16.mxu0 %v1785
        %2455 = vmatpush1.bf16.msra.mxu0 %v1784
        %2456 = vmatprep.mubr.bf16.mxu0 %v799
        %2457 = vmatmul.mubr.bf16.gmra.mrb[0].mxu0 %v798
        %v2458 = vpop.f32.mrb[0].mxu0
        %v2459 = vadd.f32 %v2406, %v2458
        %v2460 = vpop.f32.mrb[0].mxu0
        %v2461 = vadd.f32 %v2408, %v2460
        %v2462 = vpop.f32.mrb[0].mxu0
        %v2463 = vadd.f32 %v2410, %v2462
        %v2464 = vpop.f32.mrb[0].mxu0
        %v2465 = vadd.f32 %v2412, %v2464
        %2466 = vmatprep.mubr.bf16.mxu0 %v807
        %2467 = vmatmul.mubr.bf16.gmra.mrb[0].mxu0 %v806
        %v2468 = vpop.f32.mrb[0].mxu0
        %v2469 = vadd.f32 %v2416, %v2468
        %v2470 = vpop.f32.mrb[0].mxu0
        %v2471 = vadd.f32 %v2418, %v2470
        %v2472 = vpop.f32.mrb[0].mxu0
        %v2473 = vadd.f32 %v2420, %v2472
        %v2474 = vpop.f32.mrb[0].mxu0
        %v2475 = vadd.f32 %v2422, %v2474
        %2476 = vdwg.mxu0
        %2477 = vmatprep.subr.bf16.mxu0 %v1789
        %2478 = vmatpush1.bf16.msra.mxu0 %v1788
        %2479 = vmatprep.subr.bf16.mxu0 %v1793
        %2480 = vmatpush1.bf16.msra.mxu0 %v1792
        %2481 = vmatprep.subr.bf16.mxu0 %v1797
        %2482 = vmatpush1.bf16.msra.mxu0 %v1796
        %2483 = vmatprep.subr.bf16.mxu0 %v1801
        %2484 = vmatpush1.bf16.msra.mxu0 %v1800
        %2485 = vmatprep.subr.bf16.mxu0 %v1805
        %2486 = vmatpush1.bf16.msra.mxu0 %v1804
        %2487 = vmatprep.subr.bf16.mxu0 %v1809
        %2488 = vmatpush1.bf16.msra.mxu0 %v1808
        %2489 = vmatprep.subr.bf16.mxu0 %v1813
        %2490 = vmatpush1.bf16.msra.mxu0 %v1812
        %2491 = vmatprep.subr.bf16.mxu0 %v1817
        %2492 = vmatpush1.bf16.msra.mxu0 %v1816
        %2493 = vmatprep.subr.bf16.mxu0 %v1821
        %2494 = vmatpush1.bf16.msra.mxu0 %v1820
        %2495 = vmatprep.subr.bf16.mxu0 %v1825
        %2496 = vmatpush1.bf16.msra.mxu0 %v1824
        %2497 = vmatprep.subr.bf16.mxu0 %v1829
        %2498 = vmatpush1.bf16.msra.mxu0 %v1828
        %2499 = vmatprep.subr.bf16.mxu0 %v1833
        %2500 = vmatpush1.bf16.msra.mxu0 %v1832
        %2501 = vmatprep.subr.bf16.mxu0 %v1837
        %2502 = vmatpush1.bf16.msra.mxu0 %v1836
        %2503 = vmatprep.subr.bf16.mxu0 %v1841
        %2504 = vmatpush1.bf16.msra.mxu0 %v1840
        %2505 = vmatprep.subr.bf16.mxu0 %v1845
        %2506 = vmatpush1.bf16.msra.mxu0 %v1844
        %2507 = vmatprep.subr.bf16.mxu0 %v1849
        %2508 = vmatpush1.bf16.msra.mxu0 %v1848
        %2509 = vmatprep.mubr.bf16.mxu0 %v801
        %2510 = vmatmul.mubr.bf16.gmra.mrb[0].mxu0 %v800
        %v2511 = vpop.f32.mrb[0].mxu0
        %v2512 = vadd.f32 %v2459, %v2511
        %v2513 = vpop.f32.mrb[0].mxu0
        %v2514 = vadd.f32 %v2461, %v2513
        %v2515 = vpop.f32.mrb[0].mxu0
        %v2516 = vadd.f32 %v2463, %v2515
        %v2517 = vpop.f32.mrb[0].mxu0
        %v2518 = vadd.f32 %v2465, %v2517
        %2519 = vmatprep.mubr.bf16.mxu0 %v809
        %2520 = vmatmul.mubr.bf16.gmra.mrb[0].mxu0 %v808
        %v2521 = vpop.f32.mrb[0].mxu0
        %v2522 = vadd.f32 %v2469, %v2521
        %v2523 = vpop.f32.mrb[0].mxu0
        %v2524 = vadd.f32 %v2471, %v2523
        %v2525 = vpop.f32.mrb[0].mxu0
        %v2526 = vadd.f32 %v2473, %v2525
        %v2527 = vpop.f32.mrb[0].mxu0
        %v2528 = vadd.f32 %v2475, %v2527
        %2529 = vdwg.mxu0
        %v2530 = vmax.f32 %v2300, 0.0
        %v2531 = vmax.f32 %v2302, 0.0
        %v2532 = vmax.f32 %v2512, 0.0
        %v2533 = vmax.f32 %v2514, 0.0
        %v2534 = vmax.f32 %v2304, 0.0
        %v2535 = vmax.f32 %v2306, 0.0
        %v2536 = vmax.f32 %v2516, 0.0
        %v2537 = vmax.f32 %v2518, 0.0
        %v2538 = vmax.f32 %v2310, 0.0
        %v2539 = vmax.f32 %v2312, 0.0
        %v2540 = vmax.f32 %v2522, 0.0
        %v2541 = vmax.f32 %v2524, 0.0
        %v2542 = vmax.f32 %v2314, 0.0
        %v2543 = vmax.f32 %v2316, 0.0
        %v2544 = vmax.f32 %v2526, 0.0
        %v2545 = vmax.f32 %v2528, 0.0
        %v2546 = vld [vmem:[#allocation2] sm:$0xff]
        %v2547 = vld [vmem:[#allocation2 + $0x8] sm:$0xff]
        %v2548 = vld [vmem:[#allocation2 + $0x10] sm:$0xff]
        %v2549 = vld [vmem:[#allocation2 + $0x18] sm:$0xff]
        %v2550 = vpack.c.bf16 %v2534, %v2530
        %v2551 = vpack.c.bf16 %v2535, %v2531
        %v2552 = vpack.c.bf16 %v2536, %v2532
        %v2553 = vpack.c.bf16 %v2537, %v2533
        %v2554 = vpack.c.bf16 %v2542, %v2538
        %v2555 = vpack.c.bf16 %v2543, %v2539
        %v2556 = vpack.c.bf16 %v2544, %v2540
        %v2557 = vpack.c.bf16 %v2545, %v2541
        %v2558 = vld [vmem:[%s390] sm:$0xf]
        %v2559 = vld [vmem:[%s390 + $0x4] sm:$0xf]
        %v2560 = vld [vmem:[%s390 + $0x8] sm:$0xf]
        %v2561 = vld [vmem:[%s390 + $0xc] sm:$0xf]
        %v2562 = vld [vmem:[%s390 + $0x10] sm:$0xf]
        %v2563 = vld [vmem:[%s390 + $0x14] sm:$0xf]
        %v2564 = vld [vmem:[%s390 + $0x18] sm:$0xf]
        %v2565 = vld [vmem:[%s390 + $0x1c] sm:$0xf]
        %v2566 = vld [vmem:[%s390 + $0x20] sm:$0xf]
        %v2567 = vld [vmem:[%s390 + $0x24] sm:$0xf]
        %v2568 = vld [vmem:[%s390 + $0x28] sm:$0xf]
        %v2569 = vld [vmem:[%s390 + $0x2c] sm:$0xf]
        %v2570 = vld [vmem:[%s390 + $0x30] sm:$0xf]
        %v2571 = vld [vmem:[%s390 + $0x34] sm:$0xf]
        %v2572 = vld [vmem:[%s390 + $0x38] sm:$0xf]
        %v2573 = vld [vmem:[%s390 + $0x3c] sm:$0xf]
        %v2574 = vld [vmem:[%s390 + $0x40] sm:$0xf]
        %v2575 = vld [vmem:[%s390 + $0x44] sm:$0xf]
        %v2576 = vld [vmem:[%s390 + $0x48] sm:$0xf]
        %v2577 = vld [vmem:[%s390 + $0x4c] sm:$0xf]
        %v2578 = vld [vmem:[%s390 + $0x50] sm:$0xf]
        %v2579 = vld [vmem:[%s390 + $0x54] sm:$0xf]
        %v2580 = vld [vmem:[%s390 + $0x58] sm:$0xf]
        %v2581 = vld [vmem:[%s390 + $0x5c] sm:$0xf]
        %v2582 = vld [vmem:[%s390 + $0x60] sm:$0xf]
        %v2583 = vld [vmem:[%s390 + $0x64] sm:$0xf]
        %v2584 = vld [vmem:[%s390 + $0x68] sm:$0xf]
        %v2585 = vld [vmem:[%s390 + $0x6c] sm:$0xf]
        %v2586 = vld [vmem:[%s390 + $0x70] sm:$0xf]
        %v2587 = vld [vmem:[%s390 + $0x74] sm:$0xf]
        %v2588 = vld [vmem:[%s390 + $0x78] sm:$0xf]
        %v2589 = vld [vmem:[%s390 + $0x7c] sm:$0xf]
        %v2590 = vld [vmem:[%s390 + $0x80] sm:$0xf]
        %v2591 = vld [vmem:[%s390 + $0x84] sm:$0xf]
        %v2592 = vld [vmem:[%s390 + $0x88] sm:$0xf]
        %v2593 = vld [vmem:[%s390 + $0x8c] sm:$0xf]
        %v2594 = vld [vmem:[%s390 + $0x90] sm:$0xf]
        %v2595 = vld [vmem:[%s390 + $0x94] sm:$0xf]
        %v2596 = vld [vmem:[%s390 + $0x98] sm:$0xf]
        %v2597 = vld [vmem:[%s390 + $0x9c] sm:$0xf]
        %v2598 = vld [vmem:[%s390 + $0xa0] sm:$0xf]
        %v2599 = vld [vmem:[%s390 + $0xa4] sm:$0xf]
        %v2600 = vld [vmem:[%s390 + $0xa8] sm:$0xf]
        %v2601 = vld [vmem:[%s390 + $0xac] sm:$0xf]
        %v2602 = vld [vmem:[%s390 + $0xb0] sm:$0xf]
        %v2603 = vld [vmem:[%s390 + $0xb4] sm:$0xf]
        %v2604 = vld [vmem:[%s390 + $0xb8] sm:$0xf]
        %v2605 = vld [vmem:[%s390 + $0xbc] sm:$0xf]
        %v2606 = vld [vmem:[%s390 + $0xc0] sm:$0xf]
        %v2607 = vld [vmem:[%s390 + $0xc4] sm:$0xf]
        %v2608 = vld [vmem:[%s390 + $0xc8] sm:$0xf]
        %v2609 = vld [vmem:[%s390 + $0xcc] sm:$0xf]
        %v2610 = vld [vmem:[%s390 + $0xd0] sm:$0xf]
        %v2611 = vld [vmem:[%s390 + $0xd4] sm:$0xf]
        %v2612 = vld [vmem:[%s390 + $0xd8] sm:$0xf]
        %v2613 = vld [vmem:[%s390 + $0xdc] sm:$0xf]
        %v2614 = vld [vmem:[%s390 + $0xe0] sm:$0xf]
        %v2615 = vld [vmem:[%s390 + $0xe4] sm:$0xf]
        %v2616 = vld [vmem:[%s390 + $0xe8] sm:$0xf]
        %v2617 = vld [vmem:[%s390 + $0xec] sm:$0xf]
        %v2618 = vld [vmem:[%s390 + $0xf0] sm:$0xf]
        %v2619 = vld [vmem:[%s390 + $0xf4] sm:$0xf]
        %v2620 = vld [vmem:[%s390 + $0xf8] sm:$0xf]
        %v2621 = vld [vmem:[%s390 + $0xfc] sm:$0xf]
        %v2686 = vunpack.c.l.b16 %v2558
        %v2687 = vunpack.c.l.b16 %v2559
        %v2688 = vunpack.c.l.b16 %v2560
        %v2689 = vunpack.c.l.b16 %v2561
        %v2690 = vunpack.c.l.b16 %v2562
        %v2691 = vunpack.c.l.b16 %v2563
        %v2692 = vunpack.c.l.b16 %v2564
        %v2693 = vunpack.c.l.b16 %v2565
        %v2694 = vunpack.c.l.b16 %v2566
        %v2695 = vunpack.c.l.b16 %v2567
        %v2696 = vunpack.c.l.b16 %v2568
        %v2697 = vunpack.c.l.b16 %v2569
        %v2698 = vunpack.c.l.b16 %v2570
        %v2699 = vunpack.c.l.b16 %v2571
        %v2700 = vunpack.c.l.b16 %v2572
        %v2701 = vunpack.c.l.b16 %v2573
        %v2702 = vunpack.c.l.b16 %v2574
        %v2703 = vunpack.c.l.b16 %v2575
        %v2704 = vunpack.c.l.b16 %v2576
        %v2705 = vunpack.c.l.b16 %v2577
        %v2706 = vunpack.c.l.b16 %v2578
        %v2707 = vunpack.c.l.b16 %v2579
        %v2708 = vunpack.c.l.b16 %v2580
        %v2709 = vunpack.c.l.b16 %v2581
        %v2710 = vunpack.c.l.b16 %v2582
        %v2711 = vunpack.c.l.b16 %v2583
        %v2712 = vunpack.c.l.b16 %v2584
        %v2713 = vunpack.c.l.b16 %v2585
        %v2714 = vunpack.c.l.b16 %v2586
        %v2715 = vunpack.c.l.b16 %v2587
        %v2716 = vunpack.c.l.b16 %v2588
        %v2717 = vunpack.c.l.b16 %v2589
        %v2718 = vunpack.c.l.b16 %v2590
        %v2719 = vunpack.c.l.b16 %v2591
        %v2720 = vunpack.c.l.b16 %v2592
        %v2721 = vunpack.c.l.b16 %v2593
        %v2722 = vunpack.c.l.b16 %v2594
        %v2723 = vunpack.c.l.b16 %v2595
        %v2724 = vunpack.c.l.b16 %v2596
        %v2725 = vunpack.c.l.b16 %v2597
        %v2726 = vunpack.c.l.b16 %v2598
        %v2727 = vunpack.c.l.b16 %v2599
        %v2728 = vunpack.c.l.b16 %v2600
        %v2729 = vunpack.c.l.b16 %v2601
        %v2730 = vunpack.c.l.b16 %v2602
        %v2731 = vunpack.c.l.b16 %v2603
        %v2732 = vunpack.c.l.b16 %v2604
        %v2733 = vunpack.c.l.b16 %v2605
        %v2734 = vunpack.c.l.b16 %v2606
        %v2735 = vunpack.c.l.b16 %v2607
        %v2736 = vunpack.c.l.b16 %v2608
        %v2737 = vunpack.c.l.b16 %v2609
        %v2738 = vunpack.c.l.b16 %v2610
        %v2739 = vunpack.c.l.b16 %v2611
        %v2740 = vunpack.c.l.b16 %v2612
        %v2741 = vunpack.c.l.b16 %v2613
        %v2742 = vunpack.c.l.b16 %v2614
        %v2743 = vunpack.c.l.b16 %v2615
        %v2744 = vunpack.c.l.b16 %v2616
        %v2745 = vunpack.c.l.b16 %v2617
        %v2746 = vunpack.c.l.b16 %v2618
        %v2747 = vunpack.c.l.b16 %v2619
        %v2748 = vunpack.c.l.b16 %v2620
        %v2749 = vunpack.c.l.b16 %v2621
        %v2750 = vpack.c.b16 %v2687, %v2686
        %v2751 = vpack.c.b16 %v2689, %v2688
        %v2752 = vpack.c.b16 %v2691, %v2690
        %v2753 = vpack.c.b16 %v2693, %v2692
        %v2754 = vpack.c.b16 %v2695, %v2694
        %v2755 = vpack.c.b16 %v2697, %v2696
        %v2756 = vpack.c.b16 %v2699, %v2698
        %v2757 = vpack.c.b16 %v2701, %v2700
        %v2758 = vpack.c.b16 %v2703, %v2702
        %v2759 = vpack.c.b16 %v2705, %v2704
        %v2760 = vpack.c.b16 %v2707, %v2706
        %v2761 = vpack.c.b16 %v2709, %v2708
        %v2762 = vpack.c.b16 %v2711, %v2710
        %v2763 = vpack.c.b16 %v2713, %v2712
        %v2764 = vpack.c.b16 %v2715, %v2714
        %v2765 = vpack.c.b16 %v2717, %v2716
        %v2766 = vpack.c.b16 %v2719, %v2718
        %v2767 = vpack.c.b16 %v2721, %v2720
        %v2768 = vpack.c.b16 %v2723, %v2722
        %v2769 = vpack.c.b16 %v2725, %v2724
        %v2770 = vpack.c.b16 %v2727, %v2726
        %v2771 = vpack.c.b16 %v2729, %v2728
        %v2772 = vpack.c.b16 %v2731, %v2730
        %v2773 = vpack.c.b16 %v2733, %v2732
        %v2774 = vpack.c.b16 %v2735, %v2734
        %v2775 = vpack.c.b16 %v2737, %v2736
        %v2776 = vpack.c.b16 %v2739, %v2738
        %v2777 = vpack.c.b16 %v2741, %v2740
        %v2778 = vpack.c.b16 %v2743, %v2742
        %v2779 = vpack.c.b16 %v2745, %v2744
        %v2780 = vpack.c.b16 %v2747, %v2746
        %v2781 = vpack.c.b16 %v2749, %v2748
        %2814 = vmatprep.subr.bf16.mxu0 0
        %2815 = vmatpush1.bf16.msra.mxu0 %v2750
        %2816 = vmatprep.subr.bf16.mxu0 0
        %2817 = vmatpush1.bf16.msra.mxu0 %v2751
        %2818 = vmatprep.subr.bf16.mxu0 0
        %2819 = vmatpush1.bf16.msra.mxu0 %v2752
        %2820 = vmatprep.subr.bf16.mxu0 0
        %2821 = vmatpush1.bf16.msra.mxu0 %v2753
        %2822 = vmatprep.subr.bf16.mxu0 0
        %2823 = vmatpush1.bf16.msra.mxu0 %v2754
        %2824 = vmatprep.subr.bf16.mxu0 0
        %2825 = vmatpush1.bf16.msra.mxu0 %v2755
        %2826 = vmatprep.subr.bf16.mxu0 0
        %2827 = vmatpush1.bf16.msra.mxu0 %v2756
        %2828 = vmatprep.subr.bf16.mxu0 0
        %2829 = vmatpush1.bf16.msra.mxu0 %v2757
        %2830 = vmatprep.subr.bf16.mxu0 0
        %2831 = vmatpush1.bf16.msra.mxu0 %v2758
        %2832 = vmatprep.subr.bf16.mxu0 0
        %2833 = vmatpush1.bf16.msra.mxu0 %v2759
        %2834 = vmatprep.subr.bf16.mxu0 0
        %2835 = vmatpush1.bf16.msra.mxu0 %v2760
        %2836 = vmatprep.subr.bf16.mxu0 0
        %2837 = vmatpush1.bf16.msra.mxu0 %v2761
        %2838 = vmatprep.subr.bf16.mxu0 0
        %2839 = vmatpush1.bf16.msra.mxu0 %v2762
        %2840 = vmatprep.subr.bf16.mxu0 0
        %2841 = vmatpush1.bf16.msra.mxu0 %v2763
        %2842 = vmatprep.subr.bf16.mxu0 0
        %2843 = vmatpush1.bf16.msra.mxu0 %v2764
        %2844 = vmatprep.subr.bf16.mxu0 0
        %2845 = vmatpush1.bf16.msra.mxu0 %v2765
        %2846 = vmatprep.mubr.bf16.mxu0 %v2551
        %2847 = vmatmul.mubr.bf16.gmra.mrb[0].mxu0 %v2550
        %v2848 = vpop.f32.mrb[0].mxu0
        %v2849 = vadd.f32 0.0, %v2848
        %v2850 = vpop.f32.mrb[0].mxu0
        %v2851 = vpop.f32.mrb[0].mxu0
        %v2852 = vadd.f32 0.0, %v2851
        %v2853 = vpop.f32.mrb[0].mxu0
        %2854 = vmatprep.mubr.bf16.mxu0 %v2555
        %2855 = vmatmul.mubr.bf16.gmra.mrb[0].mxu0 %v2554
        %v2856 = vpop.f32.mrb[0].mxu0
        %v2857 = vadd.f32 0.0, %v2856
        %v2858 = vpop.f32.mrb[0].mxu0
        %v2859 = vpop.f32.mrb[0].mxu0
        %v2860 = vadd.f32 0.0, %v2859
        %v2861 = vpop.f32.mrb[0].mxu0
        %2862 = vdwg.mxu0
        %2863 = vmatprep.subr.bf16.mxu0 0
        %2864 = vmatpush1.bf16.msra.mxu0 %v2766
        %2865 = vmatprep.subr.bf16.mxu0 0
        %2866 = vmatpush1.bf16.msra.mxu0 %v2767
        %2867 = vmatprep.subr.bf16.mxu0 0
        %2868 = vmatpush1.bf16.msra.mxu0 %v2768
        %2869 = vmatprep.subr.bf16.mxu0 0
        %2870 = vmatpush1.bf16.msra.mxu0 %v2769
        %2871 = vmatprep.subr.bf16.mxu0 0
        %2872 = vmatpush1.bf16.msra.mxu0 %v2770
        %2873 = vmatprep.subr.bf16.mxu0 0
        %2874 = vmatpush1.bf16.msra.mxu0 %v2771
        %2875 = vmatprep.subr.bf16.mxu0 0
        %2876 = vmatpush1.bf16.msra.mxu0 %v2772
        %2877 = vmatprep.subr.bf16.mxu0 0
        %2878 = vmatpush1.bf16.msra.mxu0 %v2773
        %2879 = vmatprep.subr.bf16.mxu0 0
        %2880 = vmatpush1.bf16.msra.mxu0 %v2774
        %2881 = vmatprep.subr.bf16.mxu0 0
        %2882 = vmatpush1.bf16.msra.mxu0 %v2775
        %2883 = vmatprep.subr.bf16.mxu0 0
        %2884 = vmatpush1.bf16.msra.mxu0 %v2776
        %2885 = vmatprep.subr.bf16.mxu0 0
        %2886 = vmatpush1.bf16.msra.mxu0 %v2777
        %2887 = vmatprep.subr.bf16.mxu0 0
        %2888 = vmatpush1.bf16.msra.mxu0 %v2778
        %2889 = vmatprep.subr.bf16.mxu0 0
        %2890 = vmatpush1.bf16.msra.mxu0 %v2779
        %2891 = vmatprep.subr.bf16.mxu0 0
        %2892 = vmatpush1.bf16.msra.mxu0 %v2780
        %2893 = vmatprep.subr.bf16.mxu0 0
        %2894 = vmatpush1.bf16.msra.mxu0 %v2781
        %2895 = vmatprep.mubr.bf16.mxu0 %v2553
        %2896 = vmatmul.mubr.bf16.gmra.mrb[0].mxu0 %v2552
        %v2897 = vpop.f32.mrb[0].mxu0
        %v2898 = vadd.f32 %v2849, %v2897
        %v2899 = vpop.f32.mrb[0].mxu0
        %v2900 = vpop.f32.mrb[0].mxu0
        %v2901 = vadd.f32 %v2852, %v2900
        %v2902 = vpop.f32.mrb[0].mxu0
        %2903 = vmatprep.mubr.bf16.mxu0 %v2557
        %2904 = vmatmul.mubr.bf16.gmra.mrb[0].mxu0 %v2556
        %v2905 = vpop.f32.mrb[0].mxu0
        %v2906 = vadd.f32 %v2857, %v2905
        %v2907 = vpop.f32.mrb[0].mxu0
        %v2908 = vpop.f32.mrb[0].mxu0
        %v2909 = vadd.f32 %v2860, %v2908
        %v2910 = vpop.f32.mrb[0].mxu0
        %2911 = vdwg.mxu0
        %v2912 = vadd.f32 %v2546, %v2898
        %v2913 = vadd.f32 %v2547, %v2901
        %v2914 = vadd.f32 %v2548, %v2906
        %v2915 = vadd.f32 %v2549, %v2909
        %2916 = vst [vmem:[#allocation2] sm:$0xff] %v2912
        %2917 = vst [vmem:[#allocation2 + $0x8] sm:$0xff] %v2913
        %2918 = vst [vmem:[#allocation2 + $0x10] sm:$0xff] %v2914
        %2919 = vst [vmem:[#allocation2 + $0x18] sm:$0xff] %v2915
        %p2920 = scmp.eq.s32.totalorder %s29, 1
        // Predicated region
        $region85: #{tpu_custom_call.1} parent=51 // pred_check
          %p2921 = pneg %p2920
        $region86: #{tpu_custom_call.1} parent=51 // pred_check_branch
          %2923 = sbr.rel (%p2921) target = $region88
        $region87: #{tpu_custom_call.1} parent=51 // pred_region
          %v2924 = vld [vmem:[#allocation2] sm:$0xff]
          %v2925 = vld [vmem:[#allocation2 + $0x8] sm:$0xff]
          %v2926 = vld [vmem:[#allocation2 + $0x10] sm:$0xff]
          %v2927 = vld [vmem:[#allocation2 + $0x18] sm:$0xff]
          %v2928 = vld [vmem:[#allocation11] sm:$0x1]
          %v2930 = vlaneseq
          %v2931 = vshrl.u32 %v2930, 7
          %v2932 = vsub.s32 0, %v2931
          %v2933 = vrot.slane %v2928, %v2932
          %v2935 = vadd.f32 %v2924, %v2933
          %v2936 = vadd.f32 %v2925, %v2933
          %v2937 = vadd.f32 %v2926, %v2933
          %v2938 = vadd.f32 %v2927, %v2933
          %v2939 = vmax.f32 %v2935, 0.0
          %v2940 = vmax.f32 %v2936, 0.0
          %v2941 = vmax.f32 %v2937, 0.0
          %v2942 = vmax.f32 %v2938, 0.0
          %v2943 = vld [vmem:[#allocation12] sm:$0x1]
          %v2945 = vlaneseq
          %v2946 = vshrl.u32 %v2945, 7
          %v2947 = vsub.s32 0, %v2946
          %v2948 = vrot.slane %v2943, %v2947
          %v2950 = vmul.f32 %v2939, %v2948
          %v2951 = vmul.f32 %v2940, %v2948
          %v2952 = vmul.f32 %v2941, %v2948
          %v2953 = vmul.f32 %v2942, %v2948
          %2954 = vadd.xlane.f32.xlu0 %v2950
          %v2955 = vpop.xlane.xlu0 %2954
          %2956 = vadd.xlane.f32.xlu0 %v2951
          %v2957 = vpop.xlane.xlu0 %2956
          %2958 = vadd.xlane.f32.xlu0 %v2952
          %v2959 = vpop.xlane.xlu0 %2958
          %2960 = vadd.xlane.f32.xlu0 %v2953
          %v2961 = vpop.xlane.xlu0 %2960
          %v2962 = vld [vmem:[#allocation3] sm:$0x1]
          %v2964 = vlaneseq
          %v2965 = vshrl.u32 %v2964, 7
          %v2966 = vsub.s32 0, %v2965
          %v2967 = vrot.slane %v2962, %v2966
          %v2969 = vadd.f32 %v2955, %v2967
          %v2970 = vadd.f32 %v2957, %v2967
          %v2971 = vadd.f32 %v2959, %v2967
          %v2972 = vadd.f32 %v2961, %v2967
          %v2973 = vxor.u32 %v2969, 2147483648
          %v2974 = vxor.u32 %v2970, 2147483648
          %v2975 = vxor.u32 %v2971, 2147483648
          %v2976 = vxor.u32 %v2972, 2147483648
          %v2977 = vmul.f32 %v2973, 1.442695
          %v2978 = vpow.pop %v2977
          %v2979 = vmul.f32 %v2974, 1.442695
          %v2980 = vpow.pop %v2979
          %v2981 = vmul.f32 %v2975, 1.442695
          %v2982 = vpow.pop %v2981
          %v2983 = vmul.f32 %v2976, 1.442695
          %v2984 = vpow.pop %v2983
          %v2985 = vadd.f32 %v2978, 1.0
          %v2986 = vadd.f32 %v2980, 1.0
          %v2987 = vadd.f32 %v2982, 1.0
          %v2988 = vadd.f32 %v2984, 1.0
          %v2989 = vrcp.pop %v2985
          %v2990 = vmul.f32 1.0, %v2989
          %v2991 = vrcp.pop %v2986
          %v2992 = vmul.f32 1.0, %v2991
          %v2993 = vrcp.pop %v2987
          %v2994 = vmul.f32 1.0, %v2993
          %v2995 = vrcp.pop %v2988
          %v2996 = vmul.f32 1.0, %v2995
          %v2997 = vld [vmem:[#allocation14] sm:$0x3]
          %vm2998 = vcmask 261120
          %v3000 = vsel %vm2998, %v2997, 0
          %3002 = vmatprep.subr.mxu0 0.0
          %3003 = vmatpush1.msra.mxu0 %v2990
          %3004 = vmatprep.subr.mxu0 0.0
          %3005 = vmatpush1.msra.mxu0 %v2992
          %3006 = vmatprep.subr.mxu0 0.0
          %3007 = vmatpush1.msra.mxu0 %v2994
          %3008 = vmatprep.subr.mxu0 0.0
          %3009 = vmatpush1.msra.mxu0 %v2996
          %3010 = vmatprep.subr.mxu0 0.0
          %3011 = vmatpush1.msra.mxu0 0.0
          %3012 = vmatprep.subr.mxu0 0.0
          %3013 = vmatpush1.msra.mxu0 0.0
          %3014 = vmatprep.subr.mxu0 0.0
          %3015 = vmatpush1.msra.mxu0 0.0
          %3016 = vmatprep.subr.mxu0 0.0
          %3017 = vmatpush1.msra.mxu0 0.0
          %3018 = vmatprep.subr.mxu0 0.0
          %3019 = vmatpush1.msra.mxu0 0.0
          %3020 = vmatprep.subr.mxu0 0.0
          %3021 = vmatpush1.msra.mxu0 0.0
          %3022 = vmatprep.subr.mxu0 0.0
          %3023 = vmatpush1.msra.mxu0 0.0
          %3024 = vmatprep.subr.mxu0 0.0
          %3025 = vmatpush1.msra.mxu0 0.0
          %3026 = vmatprep.subr.mxu0 0.0
          %3027 = vmatpush1.msra.mxu0 0.0
          %3028 = vmatprep.subr.mxu0 0.0
          %3029 = vmatpush1.msra.mxu0 0.0
          %3030 = vmatprep.subr.mxu0 0.0
          %3031 = vmatpush1.msra.mxu0 0.0
          %3032 = vmatprep.subr.mxu0 0.0
          %3033 = vmatpush1.msra.mxu0 0.0
          %3034 = vmatprep.subr.mxu0 0.0
          %3035 = vmatpush1.msra.mxu0 0.0
          %3036 = vmatprep.subr.mxu0 0.0
          %3037 = vmatpush1.msra.mxu0 0.0
          %3038 = vmatprep.subr.mxu0 0.0
          %3039 = vmatpush1.msra.mxu0 0.0
          %3040 = vmatprep.subr.mxu0 0.0
          %3041 = vmatpush1.msra.mxu0 0.0
          %3042 = vmatprep.subr.mxu0 0.0
          %3043 = vmatpush1.msra.mxu0 0.0
          %3044 = vmatprep.subr.mxu0 0.0
          %3045 = vmatpush1.msra.mxu0 0.0
          %3046 = vmatprep.subr.mxu0 0.0
          %3047 = vmatpush1.msra.mxu0 0.0
          %3048 = vmatprep.subr.mxu0 0.0
          %3049 = vmatpush1.msra.mxu0 0.0
          %3050 = vmatprep.subr.mxu0 0.0
          %3051 = vmatpush1.msra.mxu0 0.0
          %3052 = vmatprep.subr.mxu0 0.0
          %3053 = vmatpush1.msra.mxu0 0.0
          %3054 = vmatprep.subr.mxu0 0.0
          %3055 = vmatpush1.msra.mxu0 0.0
          %3056 = vmatprep.subr.mxu0 0.0
          %3057 = vmatpush1.msra.mxu0 0.0
          %3058 = vmatprep.subr.mxu0 0.0
          %3059 = vmatpush1.msra.mxu0 0.0
          %3060 = vmatprep.subr.mxu0 0.0
          %3061 = vmatpush1.msra.mxu0 0.0
          %3062 = vmatprep.subr.mxu0 0.0
          %3063 = vmatpush1.msra.mxu0 0.0
          %3064 = vmatprep.subr.mxu0 0.0
          %3065 = vmatpush1.msra.mxu0 0.0
          %3066 = vmatprep.mubr.f32.mxu0 0.0
          %3067 = vmatmul.mubr.f32.gmra.mrb[0].mxu0 %v3000
          %v3068 = vpop.f32.mrb[0].mxu0
          %v3069 = vadd.f32 0.0, %v3068
          %v3070 = vpop.f32.mrb[0].mxu0
          %3071 = vdwg.mxu0
          %vm3072 = vcmask 1024
          %3073 = vst.msk [vmem:[%s8] sm:$0x3] %vm3072, %v3069
        $region88: #{tpu_custom_call.1} parent=51 // pred_fallthru
          _
        // Predicated region
        $region89: #{tpu_custom_call.1} parent=51 // pred_check
          %p3074 = pneg %p225
        $region90: #{tpu_custom_call.1} parent=51 // pred_check_branch
          %3076 = sbr.rel (%p3074) target = $region92
        $region91: #{tpu_custom_call.1} parent=51 // pred_region
          _
        $region92: #{tpu_custom_call.1} parent=51 // pred_fallthru
          _
        // Predicated region
        $region93: #{tpu_custom_call.1} parent=51 // pred_check
          %p3077 = pneg %p225
        $region94: #{tpu_custom_call.1} parent=51 // pred_check_branch
          %3079 = sbr.rel (%p3077) target = $region96
        $region95: #{tpu_custom_call.1} parent=51 // pred_region
          _
        $region96: #{tpu_custom_call.1} parent=51 // pred_fallthru
          _
      $region52: #{tpu_custom_call.1} parent=5 // pred_fallthru
        _
      %p3080 = scmp.le.s32.totalorder 2, %s24
      // Predicated region
      $region97: #{tpu_custom_call.1} parent=5 // pred_check
        %p3081 = pneg %p3080
      $region98: #{tpu_custom_call.1} parent=5 // pred_check_branch
        %3083 = sbr.rel (%p3081) target = $region100
      $region99: #{tpu_custom_call.1} parent=5 // pred_region
        %s3084 = ssub.s32 %s24, 2
      $region100: #{tpu_custom_call.1} parent=5 // pred_fallthru
        _
    $region6: #{tpu_custom_call.1} parent=1 // loop_footer
      %s28 = sadd.s32 1, %s24
    $region7: #{tpu_custom_call.1} parent=1 // loop_footer_branch
      %23 = sbr.rel target = $region3
    $region8: #{tpu_custom_call.1} parent=1 // loop_exit
      _
    %3085 = vsyncpa [#allocation5], 1
    %s3086 = scalar_lea.sflag [#allocation5], 1
    %3087 = vsyncpa %s3086, 1
    %3088 = vsyncpa [#allocation7], 1
    %s3089 = scalar_lea.sflag [#allocation7], 1
    %3090 = vsyncpa %s3089, 1
    %3091 = vsyncpa [#allocation10], 1
    %s3092 = scalar_lea.sflag [#allocation10], 1
    %3093 = vsyncpa %s3092, 1
    %3094 = vsyncpa [#allocation13], 1

</llo_original>
